<compile_context>
chip_gen: v5e
topology: v5e:2x2
jax: 0.10.0
libtpu: 0.0.40
codegen_flags: <defaults>
</compile_context>

<pallas_src>
import math

import jax
import jax.numpy as jnp
from jax.experimental import pallas as pl
from jax.experimental.pallas import tpu as pltpu


# ----------------------- fused whole-forward kernel ------------------------
def fused_forward(x_cm, in_w, in_b, stage_args, has_ds):
    """One pallas_call for the whole forward.

    x_cm : (Cin, M0) bf16   input, channels-major / lane-dense (M0 = N*H*W)
    in_w : (3, Cin) bf16, in_b : (3, 1) f32      input_to3C conv, BN folded
    stage_args[s] : dict with
        'ds'   : (M_in, M_out) bf16  2x2 avg-pool matrix (only if has_ds[s])
        'sw'   : (Cout, Cin_s) bf16, 'sb': (Cout, 1) f32  stage 1x1 conv
        'cw'   : (K, Cout)     bf16, 'cb': (K, 1) f32     classifier 1x1 conv
        'pool' : (M_out, N)    bf16                        per-sample GAP matrix
    Returns, per stage: gap (K, N) f32, cam (K, M_out) bf16 (both post-sigmoid).
    """
    # Flatten inputs in a fixed order; everything is 2-D and full-extent
    # (full-extent blocks are exempt from the (8,128) divisibility rule).
    spec = lambda a: pl.BlockSpec(a.shape, lambda i: (0, 0))
    inputs = [x_cm, in_w, in_b]
    for st, ds in zip(stage_args, has_ds):
        if ds:
            inputs.append(st["ds"])
        inputs.extend([st["sw"], st["sb"], st["cw"], st["cb"], st["pool"]])
    in_specs = [spec(a) for a in inputs]

    K = stage_args[0]["cw"].shape[0]
    N = stage_args[0]["pool"].shape[1]
    out_shapes = []
    for st in stage_args:
        m_out = st["pool"].shape[0]
        out_shapes += [jax.ShapeDtypeStruct((K, N), jnp.float32),     # GAP head
                       jax.ShapeDtypeStruct((K, m_out), jnp.bfloat16)]  # CAM
    out_specs = [pl.BlockSpec(s.shape, lambda i: (0, 0)) for s in out_shapes]

    n_in = len(inputs)
    n_stages = len(stage_args)
    has_ds = tuple(bool(d) for d in has_ds)

    def kernel(*refs):
        in_refs = refs[:n_in]
        out_refs = refs[n_in:]
        x_ref, w_ref, b_ref = in_refs[0], in_refs[1], in_refs[2]

        # input_to3C: 1x1 conv + folded BatchNorm (no activation).
        h = jnp.dot(w_ref[...], x_ref[...], preferred_element_type=jnp.float32)
        h = (h + b_ref[...]).astype(jnp.bfloat16)                       # (3, M0)

        idx = 3
        for s in range(n_stages):                     # statically unrolled
            if has_ds[s]:
                # resnet-style stride: 2x2 average pool as a bf16 matmul.
                ds_ref = in_refs[idx]
                idx += 1
                h = jnp.dot(h, ds_ref[...],
                            preferred_element_type=jnp.float32
                            ).astype(jnp.bfloat16)                      # (C, M_out)
            sw_ref, sb_ref = in_refs[idx], in_refs[idx + 1]
            cw_ref, cb_ref = in_refs[idx + 2], in_refs[idx + 3]
            pool_ref = in_refs[idx + 4]
            idx += 5

            # Stage 1x1 conv + bias + ReLU (f32 epilogue).
            y = jnp.dot(sw_ref[...], h, preferred_element_type=jnp.float32)
            y = jnp.maximum(y + sb_ref[...], 0.0)
            h = y.astype(jnp.bfloat16)                # features for next stage (VMEM)

            # Classifier logits once; reused for CAM and for the GAP head.
            cam_pre = jnp.dot(cw_ref[...], h,
                              preferred_element_type=jnp.float32) + cb_ref[...]
            gap = jnp.dot(cam_pre.astype(jnp.bfloat16), pool_ref[...],
                          preferred_element_type=jnp.float32)           # (K, N)
            out_refs[2 * s][...] = jax.nn.sigmoid(gap)
            out_refs[2 * s + 1][...] = jax.nn.sigmoid(cam_pre).astype(jnp.bfloat16)

    # Advisory cost estimate for the XLA scheduler.
    flops = 2 * in_w.shape[0] * x_cm.shape[0] * x_cm.shape[1]
    transc = 0
    cin_s = in_w.shape[0]
    m = x_cm.shape[1]
    for st, ds in zip(stage_args, has_ds):
        if ds:
            flops += 2 * cin_s * st["ds"].shape[0] * st["ds"].shape[1]
            m = st["ds"].shape[1]
        cout = st["sw"].shape[0]
        flops += 2 * cout * cin_s * m                 # stage conv
        flops += 2 * K * cout * m                     # CAM conv
        flops += 2 * K * m * N                        # GAP pool matmul
        transc += K * (m + N)                         # sigmoids
        cin_s = cout
    bytes_acc = sum(int(a.size) * a.dtype.itemsize for a in inputs)
    bytes_acc += sum(math.prod(s.shape) * s.dtype.itemsize for s in out_shapes)

    return pl.pallas_call(
        kernel,
        out_shape=tuple(out_shapes),
        grid_spec=pltpu.PrefetchScalarGridSpec(
            num_scalar_prefetch=0,
            grid=(1,),
            in_specs=in_specs,
            out_specs=out_specs,
        ),
        compiler_params=pltpu.CompilerParams(dimension_semantics=("arbitrary",)),
        cost_estimate=pl.CostEstimate(
            flops=int(flops), transcendentals=int(transc),
            bytes_accessed=int(bytes_acc)),
    )(*inputs)


# --------------------- constant pooling / stride matrices -------------------
def gap_matrix(n, hw_sp):
    # (n*hw_sp, n); column m//hw_sp gets 1/hw_sp (a power of two -> exact bf16).
    cols = jnp.arange(n * hw_sp) // hw_sp
    return (jax.nn.one_hot(cols, n, dtype=jnp.float32) / float(hw_sp)).astype(jnp.bfloat16)


def ds_matrix(n, h, w):
    # 2x2 average-pool: (n*h*w, n*(h//2)*(w//2)) with entries 0 or 0.25.
    h2, w2 = h // 2, w // 2
    m = jnp.arange(n * h * w)
    b, rem = m // (h * w), m % (h * w)
    i, j = rem // w, rem % w
    cols = (b * h2 + i // 2) * w2 + j // 2
    return (jax.nn.one_hot(cols, n * h2 * w2, dtype=jnp.float32) * 0.25).astype(jnp.bfloat16)


# --------------------------- parameters / model ----------------------------
def init_params(key, in_channels, num_classes, stage_channels):
    params = {}
    k = key

    def nxt():
        nonlocal k
        k, sub = jax.random.split(k)
        return sub

    # input_to3C = Conv2d(in_channels, 3, 1) + BatchNorm2d(3)
    # (BatchNorm in eval mode with default stats: gamma=1, beta=0, mean=0, var=1)
    w = jax.random.normal(nxt(), (3, in_channels), jnp.float32) * 0.1   # (Cout, Cin)
    b = jax.random.normal(nxt(), (3,), jnp.float32) * 0.1
    eps = 1e-5
    gamma, beta = jnp.ones((3,)), jnp.zeros((3,))
    mean, var = jnp.zeros((3,)), jnp.ones((3,))
    scale = gamma / jnp.sqrt(var + eps)
    params["in3c_w"] = (w * scale[:, None]).astype(jnp.bfloat16)        # BN folded
    params["in3c_b"] = (b * scale + (beta - mean * scale)).reshape(3, 1)

    # Synthetic backbone stages + one classifier head per stage (multi_classifier).
    cin = 3
    params["stages"] = []
    params["heads"] = []
    for cout in stage_channels:
        sw = (jax.random.normal(nxt(), (cout, cin), jnp.float32)
              / jnp.sqrt(float(cin))).astype(jnp.bfloat16)
        sb = (jax.random.normal(nxt(), (cout,), jnp.float32) * 0.05).reshape(cout, 1)
        params["stages"].append((sw, sb))
        cw = (jax.random.normal(nxt(), (num_classes, cout), jnp.float32)
              / jnp.sqrt(float(cout))).astype(jnp.bfloat16)
        cb = (jax.random.normal(nxt(), (num_classes,), jnp.float32) * 0.05
              ).reshape(num_classes, 1)
        params["heads"].append((cw, cb))
        cin = cout
    return params


def forward(params, x_nchw, downsample):
    """Returns (out_for_result, out_for_loss_function, class_activation_map_list)."""
    N, Cin, H, W = x_nchw.shape
    K = params["heads"][0][0].shape[0]
    # NCHW -> channels-major lane-dense (C, N*H*W), bf16 MXU feed.
    x_cm = jnp.transpose(x_nchw, (1, 0, 2, 3)).reshape(Cin, N * H * W).astype(jnp.bfloat16)

    stage_args, spatial = [], []
    hh, ww = H, W
    for (sw, sb), (cw, cb), ds in zip(params["stages"], params["heads"], downsample):
        st = {"sw": sw, "sb": sb, "cw": cw, "cb": cb}
        if ds:
            st["ds"] = ds_matrix(N, hh, ww)
            hh, ww = hh // 2, ww // 2
        st["pool"] = gap_matrix(N, hh * ww)
        stage_args.append(st)
        spatial.append((hh, ww))

    outs = fused_forward(x_cm, params["in3c_w"], params["in3c_b"], stage_args, downsample)

    out_list, cam_list = [], []
    for s, (hh, ww) in enumerate(spatial):
        gap_kn = outs[2 * s]                               # (K, N) f32, post-sigmoid
        cam_km = outs[2 * s + 1]                           # (K, N*hh*ww) bf16, post-sigmoid
        out_list.append(gap_kn.T)                          # (N, K)
        cam = cam_km.astype(jnp.float32).reshape(K, N, hh, ww)
        # TODO(synk): bilinear upsample (F.interpolate) kept in plain JAX.
        cam = jax.image.resize(cam, (K, N, H, W), method="bilinear")
        cam_list.append(jnp.transpose(cam, (1, 0, 2, 3)))  # (N, K, H, W)

    out_for_result = out_list[-1]                          # (N, K)
    out_for_loss = jnp.stack(out_list, axis=-1)            # (N, K, num_stages)
    return out_for_result, out_for_loss, cam_list


# ---------------------------------- main ------------------------------------
if __name__ == "__main__":
    key = jax.random.PRNGKey(0)
    kx, kp = jax.random.split(key)

    N, C, H, W = 2, 4, 16, 16
    num_classes = 5
    stage_channels = (8, 16, 24, 32)
    downsample = (True, True, True, False)    # spatial: 16 -> 8 -> 4 -> 2 -> 2

    x = jax.random.normal(kx, (N, C, H, W), jnp.float32)
    params = init_params(kp, C, num_classes, stage_channels)

    fwd = jax.jit(forward, static_argnames="downsample")
    out_res, out_loss, cams = fwd(params, x, downsample=downsample)
    jax.block_until_ready((out_res, out_loss, cams))

    assert out_res.shape == (N, num_classes)
    assert out_loss.shape == (N, num_classes, len(stage_channels))
    assert all(c.shape == (N, num_classes, H, W) for c in cams)
    assert bool(jnp.all((out_res >= 0) & (out_res <= 1)))          # sigmoid range
    print("KERNEL_OK")
</pallas_src>

<mosaic_0001>
module attributes {stable_mosaic.version = 11 : i64} {
  func.func @kernel(%arg0: i32, %arg1: memref<4x512xbf16, #tpu.memory_space<vmem>>, %arg2: memref<3x4xbf16, #tpu.memory_space<vmem>>, %arg3: memref<3x1xf32, #tpu.memory_space<vmem>>, %arg4: memref<512x128xbf16, #tpu.memory_space<vmem>>, %arg5: memref<8x3xbf16, #tpu.memory_space<vmem>>, %arg6: memref<8x1xf32, #tpu.memory_space<vmem>>, %arg7: memref<5x8xbf16, #tpu.memory_space<vmem>>, %arg8: memref<5x1xf32, #tpu.memory_space<vmem>>, %arg9: memref<128x2xbf16, #tpu.memory_space<vmem>>, %arg10: memref<128x32xbf16, #tpu.memory_space<vmem>>, %arg11: memref<16x8xbf16, #tpu.memory_space<vmem>>, %arg12: memref<16x1xf32, #tpu.memory_space<vmem>>, %arg13: memref<5x16xbf16, #tpu.memory_space<vmem>>, %arg14: memref<5x1xf32, #tpu.memory_space<vmem>>, %arg15: memref<32x2xbf16, #tpu.memory_space<vmem>>, %arg16: memref<32x8xbf16, #tpu.memory_space<vmem>>, %arg17: memref<24x16xbf16, #tpu.memory_space<vmem>>, %arg18: memref<24x1xf32, #tpu.memory_space<vmem>>, %arg19: memref<5x24xbf16, #tpu.memory_space<vmem>>, %arg20: memref<5x1xf32, #tpu.memory_space<vmem>>, %arg21: memref<8x2xbf16, #tpu.memory_space<vmem>>, %arg22: memref<32x24xbf16, #tpu.memory_space<vmem>>, %arg23: memref<32x1xf32, #tpu.memory_space<vmem>>, %arg24: memref<5x32xbf16, #tpu.memory_space<vmem>>, %arg25: memref<5x1xf32, #tpu.memory_space<vmem>>, %arg26: memref<8x2xbf16, #tpu.memory_space<vmem>>, %arg27: memref<5x2xf32, #tpu.memory_space<vmem>>, %arg28: memref<5x128xbf16, #tpu.memory_space<vmem>>, %arg29: memref<5x2xf32, #tpu.memory_space<vmem>>, %arg30: memref<5x32xbf16, #tpu.memory_space<vmem>>, %arg31: memref<5x2xf32, #tpu.memory_space<vmem>>, %arg32: memref<5x8xbf16, #tpu.memory_space<vmem>>, %arg33: memref<5x2xf32, #tpu.memory_space<vmem>>, %arg34: memref<5x8xbf16, #tpu.memory_space<vmem>>) attributes {dimension_semantics = [#tpu.dimension_semantics<arbitrary>], iteration_bounds = array<i64: 1>, scalar_prefetch = 0 : i64, scratch_operands = 0 : i64, tpu.core_type = #tpu.core_type<tc>, window_params = [{pipeline_mode = #tpu.pipeline_mode<synchronous>, transform_indices = @transform_0, window_bounds = array<i64: 4, 512>}, {pipeline_mode = #tpu.pipeline_mode<synchronous>, transform_indices = @transform_1, window_bounds = array<i64: 3, 4>}, {pipeline_mode = #tpu.pipeline_mode<synchronous>, transform_indices = @transform_2, window_bounds = array<i64: 3, 1>}, {pipeline_mode = #tpu.pipeline_mode<synchronous>, transform_indices = @transform_3, window_bounds = array<i64: 512, 128>}, {pipeline_mode = #tpu.pipeline_mode<synchronous>, transform_indices = @transform_4, window_bounds = array<i64: 8, 3>}, {pipeline_mode = #tpu.pipeline_mode<synchronous>, transform_indices = @transform_5, window_bounds = array<i64: 8, 1>}, {pipeline_mode = #tpu.pipeline_mode<synchronous>, transform_indices = @transform_6, window_bounds = array<i64: 5, 8>}, {pipeline_mode = #tpu.pipeline_mode<synchronous>, transform_indices = @transform_7, window_bounds = array<i64: 5, 1>}, {pipeline_mode = #tpu.pipeline_mode<synchronous>, transform_indices = @transform_8, window_bounds = array<i64: 128, 2>}, {pipeline_mode = #tpu.pipeline_mode<synchronous>, transform_indices = @transform_9, window_bounds = array<i64: 128, 32>}, {pipeline_mode = #tpu.pipeline_mode<synchronous>, transform_indices = @transform_10, window_bounds = array<i64: 16, 8>}, {pipeline_mode = #tpu.pipeline_mode<synchronous>, transform_indices = @transform_11, window_bounds = array<i64: 16, 1>}, {pipeline_mode = #tpu.pipeline_mode<synchronous>, transform_indices = @transform_12, window_bounds = array<i64: 5, 16>}, {pipeline_mode = #tpu.pipeline_mode<synchronous>, transform_indices = @transform_13, window_bounds = array<i64: 5, 1>}, {pipeline_mode = #tpu.pipeline_mode<synchronous>, transform_indices = @transform_14, window_bounds = array<i64: 32, 2>}, {pipeline_mode = #tpu.pipeline_mode<synchronous>, transform_indices = @transform_15, window_bounds = array<i64: 32, 8>}, {pipeline_mode = #tpu.pipeline_mode<synchronous>, transform_indices = @transform_16, window_bounds = array<i64: 24, 16>}, {pipeline_mode = #tpu.pipeline_mode<synchronous>, transform_indices = @transform_17, window_bounds = array<i64: 24, 1>}, {pipeline_mode = #tpu.pipeline_mode<synchronous>, transform_indices = @transform_18, window_bounds = array<i64: 5, 24>}, {pipeline_mode = #tpu.pipeline_mode<synchronous>, transform_indices = @transform_19, window_bounds = array<i64: 5, 1>}, {pipeline_mode = #tpu.pipeline_mode<synchronous>, transform_indices = @transform_20, window_bounds = array<i64: 8, 2>}, {pipeline_mode = #tpu.pipeline_mode<synchronous>, transform_indices = @transform_21, window_bounds = array<i64: 32, 24>}, {pipeline_mode = #tpu.pipeline_mode<synchronous>, transform_indices = @transform_22, window_bounds = array<i64: 32, 1>}, {pipeline_mode = #tpu.pipeline_mode<synchronous>, transform_indices = @transform_23, window_bounds = array<i64: 5, 32>}, {pipeline_mode = #tpu.pipeline_mode<synchronous>, transform_indices = @transform_24, window_bounds = array<i64: 5, 1>}, {pipeline_mode = #tpu.pipeline_mode<synchronous>, transform_indices = @transform_25, window_bounds = array<i64: 8, 2>}, {pipeline_mode = #tpu.pipeline_mode<synchronous>, transform_indices = @transform_26, window_bounds = array<i64: 5, 2>}, {pipeline_mode = #tpu.pipeline_mode<synchronous>, transform_indices = @transform_27, window_bounds = array<i64: 5, 128>}, {pipeline_mode = #tpu.pipeline_mode<synchronous>, transform_indices = @transform_28, window_bounds = array<i64: 5, 2>}, {pipeline_mode = #tpu.pipeline_mode<synchronous>, transform_indices = @transform_29, window_bounds = array<i64: 5, 32>}, {pipeline_mode = #tpu.pipeline_mode<synchronous>, transform_indices = @transform_30, window_bounds = array<i64: 5, 2>}, {pipeline_mode = #tpu.pipeline_mode<synchronous>, transform_indices = @transform_31, window_bounds = array<i64: 5, 8>}, {pipeline_mode = #tpu.pipeline_mode<synchronous>, transform_indices = @transform_32, window_bounds = array<i64: 5, 2>}, {pipeline_mode = #tpu.pipeline_mode<synchronous>, transform_indices = @transform_33, window_bounds = array<i64: 5, 8>}]} {
    %c0 = arith.constant 0 : index
    %c0_0 = arith.constant 0 : index
    %0 = vector.load %arg2[%c0, %c0_0] : memref<3x4xbf16, #tpu.memory_space<vmem>>, vector<3x4xbf16>
    %c0_1 = arith.constant 0 : index
    %c0_2 = arith.constant 0 : index
    %1 = vector.load %arg1[%c0_1, %c0_2] : memref<4x512xbf16, #tpu.memory_space<vmem>>, vector<4x512xbf16>
    %cst = arith.constant dense<0.000000e+00> : vector<3x512xf32>
    %2 = tpu.matmul %0, %1, %cst {dimension_numbers = #tpu.dot_dimension_numbers<[1], [0], [0], [1], [0, 0, 1, 1], [], []>} : vector<3x4xbf16>, vector<4x512xbf16>, vector<3x512xf32> -> vector<3x512xf32>
    %c0_3 = arith.constant 0 : index
    %c0_4 = arith.constant 0 : index
    %3 = vector.load %arg3[%c0_3, %c0_4] : memref<3x1xf32, #tpu.memory_space<vmem>>, vector<3x1xf32>
    %4 = vector.broadcast %3 : vector<3x1xf32> to vector<3x512xf32>
    %5 = arith.addf %2, %4 : vector<3x512xf32>
    %6 = arith.truncf %5 : vector<3x512xf32> to vector<3x512xbf16>
    %c0_5 = arith.constant 0 : index
    %c0_6 = arith.constant 0 : index
    %7 = vector.load %arg4[%c0_5, %c0_6] : memref<512x128xbf16, #tpu.memory_space<vmem>>, vector<512x128xbf16>
    %cst_7 = arith.constant dense<0.000000e+00> : vector<3x128xf32>
    %8 = tpu.matmul %6, %7, %cst_7 {dimension_numbers = #tpu.dot_dimension_numbers<[1], [0], [0], [1], [0, 0, 1, 1], [], []>} : vector<3x512xbf16>, vector<512x128xbf16>, vector<3x128xf32> -> vector<3x128xf32>
    %9 = arith.truncf %8 : vector<3x128xf32> to vector<3x128xbf16>
    %c0_8 = arith.constant 0 : index
    %c0_9 = arith.constant 0 : index
    %10 = vector.load %arg5[%c0_8, %c0_9] : memref<8x3xbf16, #tpu.memory_space<vmem>>, vector<8x3xbf16>
    %cst_10 = arith.constant dense<0.000000e+00> : vector<8x128xf32>
    %11 = tpu.matmul %10, %9, %cst_10 {dimension_numbers = #tpu.dot_dimension_numbers<[1], [0], [0], [1], [0, 0, 1, 1], [], []>} : vector<8x3xbf16>, vector<3x128xbf16>, vector<8x128xf32> -> vector<8x128xf32>
    %c0_11 = arith.constant 0 : index
    %c0_12 = arith.constant 0 : index
    %12 = vector.load %arg6[%c0_11, %c0_12] : memref<8x1xf32, #tpu.memory_space<vmem>>, vector<8x1xf32>
    %13 = vector.broadcast %12 : vector<8x1xf32> to vector<8x128xf32>
    %14 = arith.addf %11, %13 : vector<8x128xf32>
    %cst_13 = arith.constant 0.000000e+00 : f32
    %15 = vector.broadcast %cst_13 : f32 to vector<8x128xf32>
    %16 = arith.maximumf %14, %15 : vector<8x128xf32>
    %17 = arith.truncf %16 : vector<8x128xf32> to vector<8x128xbf16>
    %c0_14 = arith.constant 0 : index
    %c0_15 = arith.constant 0 : index
    %18 = vector.load %arg7[%c0_14, %c0_15] : memref<5x8xbf16, #tpu.memory_space<vmem>>, vector<5x8xbf16>
    %cst_16 = arith.constant dense<0.000000e+00> : vector<5x128xf32>
    %19 = tpu.matmul %18, %17, %cst_16 {dimension_numbers = #tpu.dot_dimension_numbers<[1], [0], [0], [1], [0, 0, 1, 1], [], []>} : vector<5x8xbf16>, vector<8x128xbf16>, vector<5x128xf32> -> vector<5x128xf32>
    %c0_17 = arith.constant 0 : index
    %c0_18 = arith.constant 0 : index
    %20 = vector.load %arg8[%c0_17, %c0_18] : memref<5x1xf32, #tpu.memory_space<vmem>>, vector<5x1xf32>
    %21 = vector.broadcast %20 : vector<5x1xf32> to vector<5x128xf32>
    %22 = arith.addf %19, %21 : vector<5x128xf32>
    %23 = arith.truncf %22 : vector<5x128xf32> to vector<5x128xbf16>
    %c0_19 = arith.constant 0 : index
    %c0_20 = arith.constant 0 : index
    %24 = vector.load %arg9[%c0_19, %c0_20] : memref<128x2xbf16, #tpu.memory_space<vmem>>, vector<128x2xbf16>
    %cst_21 = arith.constant dense<0.000000e+00> : vector<5x2xf32>
    %25 = tpu.matmul %23, %24, %cst_21 {dimension_numbers = #tpu.dot_dimension_numbers<[1], [0], [0], [1], [0, 0, 1, 1], [], []>} : vector<5x128xbf16>, vector<128x2xbf16>, vector<5x2xf32> -> vector<5x2xf32>
    %26 = arith.negf %25 : vector<5x2xf32>
    %27 = math.exp %26 : vector<5x2xf32>
    %cst_22 = arith.constant 1.000000e+00 : f32
    %28 = vector.broadcast %cst_22 : f32 to vector<5x2xf32>
    %29 = arith.addf %28, %27 : vector<5x2xf32>
    %30 = arith.divf %28, %29 : vector<5x2xf32>
    %c0_23 = arith.constant 0 : index
    %c0_24 = arith.constant 0 : index
    %31 = vector.load %arg27[%c0_23, %c0_24] : memref<5x2xf32, #tpu.memory_space<vmem>>, vector<5x2xf32>
    tpu.vector_store %arg27[%c0_23, %c0_24], %30 {strides = array<i32>} : memref<5x2xf32, #tpu.memory_space<vmem>>, vector<5x2xf32>,
    %32 = arith.negf %22 : vector<5x128xf32>
    %33 = math.exp %32 : vector<5x128xf32>
    %cst_25 = arith.constant 1.000000e+00 : f32
    %34 = vector.broadcast %cst_25 : f32 to vector<5x128xf32>
    %35 = arith.addf %34, %33 : vector<5x128xf32>
    %36 = arith.divf %34, %35 : vector<5x128xf32>
    %37 = arith.truncf %36 : vector<5x128xf32> to vector<5x128xbf16>
    %c0_26 = arith.constant 0 : index
    %c0_27 = arith.constant 0 : index
    %38 = vector.load %arg28[%c0_26, %c0_27] : memref<5x128xbf16, #tpu.memory_space<vmem>>, vector<5x128xbf16>
    tpu.vector_store %arg28[%c0_26, %c0_27], %37 {strides = array<i32>} : memref<5x128xbf16, #tpu.memory_space<vmem>>, vector<5x128xbf16>,
    %c0_28 = arith.constant 0 : index
    %c0_29 = arith.constant 0 : index
    %39 = vector.load %arg10[%c0_28, %c0_29] : memref<128x32xbf16, #tpu.memory_space<vmem>>, vector<128x32xbf16>
    %cst_30 = arith.constant dense<0.000000e+00> : vector<8x32xf32>
    %40 = tpu.matmul %17, %39, %cst_30 {dimension_numbers = #tpu.dot_dimension_numbers<[1], [0], [0], [1], [0, 0, 1, 1], [], []>} : vector<8x128xbf16>, vector<128x32xbf16>, vector<8x32xf32> -> vector<8x32xf32>
    %41 = arith.truncf %40 : vector<8x32xf32> to vector<8x32xbf16>
    %c0_31 = arith.constant 0 : index
    %c0_32 = arith.constant 0 : index
    %42 = vector.load %arg11[%c0_31, %c0_32] : memref<16x8xbf16, #tpu.memory_space<vmem>>, vector<16x8xbf16>
    %cst_33 = arith.constant dense<0.000000e+00> : vector<16x32xf32>
    %43 = tpu.matmul %42, %41, %cst_33 {dimension_numbers = #tpu.dot_dimension_numbers<[1], [0], [0], [1], [0, 0, 1, 1], [], []>} : vector<16x8xbf16>, vector<8x32xbf16>, vector<16x32xf32> -> vector<16x32xf32>
    %c0_34 = arith.constant 0 : index
    %c0_35 = arith.constant 0 : index
    %44 = vector.load %arg12[%c0_34, %c0_35] : memref<16x1xf32, #tpu.memory_space<vmem>>, vector<16x1xf32>
    %45 = vector.broadcast %44 : vector<16x1xf32> to vector<16x32xf32>
    %46 = arith.addf %43, %45 : vector<16x32xf32>
    %cst_36 = arith.constant 0.000000e+00 : f32
    %47 = vector.broadcast %cst_36 : f32 to vector<16x32xf32>
    %48 = arith.maximumf %46, %47 : vector<16x32xf32>
    %49 = arith.truncf %48 : vector<16x32xf32> to vector<16x32xbf16>
    %c0_37 = arith.constant 0 : index
    %c0_38 = arith.constant 0 : index
    %50 = vector.load %arg13[%c0_37, %c0_38] : memref<5x16xbf16, #tpu.memory_space<vmem>>, vector<5x16xbf16>
    %cst_39 = arith.constant dense<0.000000e+00> : vector<5x32xf32>
    %51 = tpu.matmul %50, %49, %cst_39 {dimension_numbers = #tpu.dot_dimension_numbers<[1], [0], [0], [1], [0, 0, 1, 1], [], []>} : vector<5x16xbf16>, vector<16x32xbf16>, vector<5x32xf32> -> vector<5x32xf32>
    %c0_40 = arith.constant 0 : index
    %c0_41 = arith.constant 0 : index
    %52 = vector.load %arg14[%c0_40, %c0_41] : memref<5x1xf32, #tpu.memory_space<vmem>>, vector<5x1xf32>
    %53 = vector.broadcast %52 : vector<5x1xf32> to vector<5x32xf32>
    %54 = arith.addf %51, %53 : vector<5x32xf32>
    %55 = arith.truncf %54 : vector<5x32xf32> to vector<5x32xbf16>
    %c0_42 = arith.constant 0 : index
    %c0_43 = arith.constant 0 : index
    %56 = vector.load %arg15[%c0_42, %c0_43] : memref<32x2xbf16, #tpu.memory_space<vmem>>, vector<32x2xbf16>
    %cst_44 = arith.constant dense<0.000000e+00> : vector<5x2xf32>
    %57 = tpu.matmul %55, %56, %cst_44 {dimension_numbers = #tpu.dot_dimension_numbers<[1], [0], [0], [1], [0, 0, 1, 1], [], []>} : vector<5x32xbf16>, vector<32x2xbf16>, vector<5x2xf32> -> vector<5x2xf32>
    %58 = arith.negf %57 : vector<5x2xf32>
    %59 = math.exp %58 : vector<5x2xf32>
    %cst_45 = arith.constant 1.000000e+00 : f32
    %60 = vector.broadcast %cst_45 : f32 to vector<5x2xf32>
    %61 = arith.addf %60, %59 : vector<5x2xf32>
    %62 = arith.divf %60, %61 : vector<5x2xf32>
    %c0_46 = arith.constant 0 : index
    %c0_47 = arith.constant 0 : index
    %63 = vector.load %arg29[%c0_46, %c0_47] : memref<5x2xf32, #tpu.memory_space<vmem>>, vector<5x2xf32>
    tpu.vector_store %arg29[%c0_46, %c0_47], %62 {strides = array<i32>} : memref<5x2xf32, #tpu.memory_space<vmem>>, vector<5x2xf32>,
    %64 = arith.negf %54 : vector<5x32xf32>
    %65 = math.exp %64 : vector<5x32xf32>
    %cst_48 = arith.constant 1.000000e+00 : f32
    %66 = vector.broadcast %cst_48 : f32 to vector<5x32xf32>
    %67 = arith.addf %66, %65 : vector<5x32xf32>
    %68 = arith.divf %66, %67 : vector<5x32xf32>
    %69 = arith.truncf %68 : vector<5x32xf32> to vector<5x32xbf16>
    %c0_49 = arith.constant 0 : index
    %c0_50 = arith.constant 0 : index
    %70 = vector.load %arg30[%c0_49, %c0_50] : memref<5x32xbf16, #tpu.memory_space<vmem>>, vector<5x32xbf16>
    tpu.vector_store %arg30[%c0_49, %c0_50], %69 {strides = array<i32>} : memref<5x32xbf16, #tpu.memory_space<vmem>>, vector<5x32xbf16>,
    %c0_51 = arith.constant 0 : index
    %c0_52 = arith.constant 0 : index
    %71 = vector.load %arg16[%c0_51, %c0_52] : memref<32x8xbf16, #tpu.memory_space<vmem>>, vector<32x8xbf16>
    %cst_53 = arith.constant dense<0.000000e+00> : vector<16x8xf32>
    %72 = tpu.matmul %49, %71, %cst_53 {dimension_numbers = #tpu.dot_dimension_numbers<[1], [0], [0], [1], [0, 0, 1, 1], [], []>} : vector<16x32xbf16>, vector<32x8xbf16>, vector<16x8xf32> -> vector<16x8xf32>
    %73 = arith.truncf %72 : vector<16x8xf32> to vector<16x8xbf16>
    %c0_54 = arith.constant 0 : index
    %c0_55 = arith.constant 0 : index
    %74 = vector.load %arg17[%c0_54, %c0_55] : memref<24x16xbf16, #tpu.memory_space<vmem>>, vector<24x16xbf16>
    %cst_56 = arith.constant dense<0.000000e+00> : vector<24x8xf32>
    %75 = tpu.matmul %74, %73, %cst_56 {dimension_numbers = #tpu.dot_dimension_numbers<[1], [0], [0], [1], [0, 0, 1, 1], [], []>} : vector<24x16xbf16>, vector<16x8xbf16>, vector<24x8xf32> -> vector<24x8xf32>
    %c0_57 = arith.constant 0 : index
    %c0_58 = arith.constant 0 : index
    %76 = vector.load %arg18[%c0_57, %c0_58] : memref<24x1xf32, #tpu.memory_space<vmem>>, vector<24x1xf32>
    %77 = vector.broadcast %76 : vector<24x1xf32> to vector<24x8xf32>
    %78 = arith.addf %75, %77 : vector<24x8xf32>
    %cst_59 = arith.constant 0.000000e+00 : f32
    %79 = vector.broadcast %cst_59 : f32 to vector<24x8xf32>
    %80 = arith.maximumf %78, %79 : vector<24x8xf32>
    %81 = arith.truncf %80 : vector<24x8xf32> to vector<24x8xbf16>
    %c0_60 = arith.constant 0 : index
    %c0_61 = arith.constant 0 : index
    %82 = vector.load %arg19[%c0_60, %c0_61] : memref<5x24xbf16, #tpu.memory_space<vmem>>, vector<5x24xbf16>
    %cst_62 = arith.constant dense<0.000000e+00> : vector<5x8xf32>
    %83 = tpu.matmul %82, %81, %cst_62 {dimension_numbers = #tpu.dot_dimension_numbers<[1], [0], [0], [1], [0, 0, 1, 1], [], []>} : vector<5x24xbf16>, vector<24x8xbf16>, vector<5x8xf32> -> vector<5x8xf32>
    %c0_63 = arith.constant 0 : index
    %c0_64 = arith.constant 0 : index
    %84 = vector.load %arg20[%c0_63, %c0_64] : memref<5x1xf32, #tpu.memory_space<vmem>>, vector<5x1xf32>
    %85 = vector.broadcast %84 : vector<5x1xf32> to vector<5x8xf32>
    %86 = arith.addf %83, %85 : vector<5x8xf32>
    %87 = arith.truncf %86 : vector<5x8xf32> to vector<5x8xbf16>
    %c0_65 = arith.constant 0 : index
    %c0_66 = arith.constant 0 : index
    %88 = vector.load %arg21[%c0_65, %c0_66] : memref<8x2xbf16, #tpu.memory_space<vmem>>, vector<8x2xbf16>
    %cst_67 = arith.constant dense<0.000000e+00> : vector<5x2xf32>
    %89 = tpu.matmul %87, %88, %cst_67 {dimension_numbers = #tpu.dot_dimension_numbers<[1], [0], [0], [1], [0, 0, 1, 1], [], []>} : vector<5x8xbf16>, vector<8x2xbf16>, vector<5x2xf32> -> vector<5x2xf32>
    %90 = arith.negf %89 : vector<5x2xf32>
    %91 = math.exp %90 : vector<5x2xf32>
    %cst_68 = arith.constant 1.000000e+00 : f32
    %92 = vector.broadcast %cst_68 : f32 to vector<5x2xf32>
    %93 = arith.addf %92, %91 : vector<5x2xf32>
    %94 = arith.divf %92, %93 : vector<5x2xf32>
    %c0_69 = arith.constant 0 : index
    %c0_70 = arith.constant 0 : index
    %95 = vector.load %arg31[%c0_69, %c0_70] : memref<5x2xf32, #tpu.memory_space<vmem>>, vector<5x2xf32>
    tpu.vector_store %arg31[%c0_69, %c0_70], %94 {strides = array<i32>} : memref<5x2xf32, #tpu.memory_space<vmem>>, vector<5x2xf32>,
    %96 = arith.negf %86 : vector<5x8xf32>
    %97 = math.exp %96 : vector<5x8xf32>
    %cst_71 = arith.constant 1.000000e+00 : f32
    %98 = vector.broadcast %cst_71 : f32 to vector<5x8xf32>
    %99 = arith.addf %98, %97 : vector<5x8xf32>
    %100 = arith.divf %98, %99 : vector<5x8xf32>
    %101 = arith.truncf %100 : vector<5x8xf32> to vector<5x8xbf16>
    %c0_72 = arith.constant 0 : index
    %c0_73 = arith.constant 0 : index
    %102 = vector.load %arg32[%c0_72, %c0_73] : memref<5x8xbf16, #tpu.memory_space<vmem>>, vector<5x8xbf16>
    tpu.vector_store %arg32[%c0_72, %c0_73], %101 {strides = array<i32>} : memref<5x8xbf16, #tpu.memory_space<vmem>>, vector<5x8xbf16>,
    %c0_74 = arith.constant 0 : index
    %c0_75 = arith.constant 0 : index
    %103 = vector.load %arg22[%c0_74, %c0_75] : memref<32x24xbf16, #tpu.memory_space<vmem>>, vector<32x24xbf16>
    %cst_76 = arith.constant dense<0.000000e+00> : vector<32x8xf32>
    %104 = tpu.matmul %103, %81, %cst_76 {dimension_numbers = #tpu.dot_dimension_numbers<[1], [0], [0], [1], [0, 0, 1, 1], [], []>} : vector<32x24xbf16>, vector<24x8xbf16>, vector<32x8xf32> -> vector<32x8xf32>
    %c0_77 = arith.constant 0 : index
    %c0_78 = arith.constant 0 : index
    %105 = vector.load %arg23[%c0_77, %c0_78] : memref<32x1xf32, #tpu.memory_space<vmem>>, vector<32x1xf32>
    %106 = vector.broadcast %105 : vector<32x1xf32> to vector<32x8xf32>
    %107 = arith.addf %104, %106 : vector<32x8xf32>
    %cst_79 = arith.constant 0.000000e+00 : f32
    %108 = vector.broadcast %cst_79 : f32 to vector<32x8xf32>
    %109 = arith.maximumf %107, %108 : vector<32x8xf32>
    %110 = arith.truncf %109 : vector<32x8xf32> to vector<32x8xbf16>
    %c0_80 = arith.constant 0 : index
    %c0_81 = arith.constant 0 : index
    %111 = vector.load %arg24[%c0_80, %c0_81] : memref<5x32xbf16, #tpu.memory_space<vmem>>, vector<5x32xbf16>
    %cst_82 = arith.constant dense<0.000000e+00> : vector<5x8xf32>
    %112 = tpu.matmul %111, %110, %cst_82 {dimension_numbers = #tpu.dot_dimension_numbers<[1], [0], [0], [1], [0, 0, 1, 1], [], []>} : vector<5x32xbf16>, vector<32x8xbf16>, vector<5x8xf32> -> vector<5x8xf32>
    %c0_83 = arith.constant 0 : index
    %c0_84 = arith.constant 0 : index
    %113 = vector.load %arg25[%c0_83, %c0_84] : memref<5x1xf32, #tpu.memory_space<vmem>>, vector<5x1xf32>
    %114 = vector.broadcast %113 : vector<5x1xf32> to vector<5x8xf32>
    %115 = arith.addf %112, %114 : vector<5x8xf32>
    %116 = arith.truncf %115 : vector<5x8xf32> to vector<5x8xbf16>
    %c0_85 = arith.constant 0 : index
    %c0_86 = arith.constant 0 : index
    %117 = vector.load %arg26[%c0_85, %c0_86] : memref<8x2xbf16, #tpu.memory_space<vmem>>, vector<8x2xbf16>
    %cst_87 = arith.constant dense<0.000000e+00> : vector<5x2xf32>
    %118 = tpu.matmul %116, %117, %cst_87 {dimension_numbers = #tpu.dot_dimension_numbers<[1], [0], [0], [1], [0, 0, 1, 1], [], []>} : vector<5x8xbf16>, vector<8x2xbf16>, vector<5x2xf32> -> vector<5x2xf32>
    %119 = arith.negf %118 : vector<5x2xf32>
    %120 = math.exp %119 : vector<5x2xf32>
    %cst_88 = arith.constant 1.000000e+00 : f32
    %121 = vector.broadcast %cst_88 : f32 to vector<5x2xf32>
    %122 = arith.addf %121, %120 : vector<5x2xf32>
    %123 = arith.divf %121, %122 : vector<5x2xf32>
    %c0_89 = arith.constant 0 : index
    %c0_90 = arith.constant 0 : index
    %124 = vector.load %arg33[%c0_89, %c0_90] : memref<5x2xf32, #tpu.memory_space<vmem>>, vector<5x2xf32>
    tpu.vector_store %arg33[%c0_89, %c0_90], %123 {strides = array<i32>} : memref<5x2xf32, #tpu.memory_space<vmem>>, vector<5x2xf32>,
    %125 = arith.negf %115 : vector<5x8xf32>
    %126 = math.exp %125 : vector<5x8xf32>
    %cst_91 = arith.constant 1.000000e+00 : f32
    %127 = vector.broadcast %cst_91 : f32 to vector<5x8xf32>
    %128 = arith.addf %127, %126 : vector<5x8xf32>
    %129 = arith.divf %127, %128 : vector<5x8xf32>
    %130 = arith.truncf %129 : vector<5x8xf32> to vector<5x8xbf16>
    %c0_92 = arith.constant 0 : index
    %c0_93 = arith.constant 0 : index
    %131 = vector.load %arg34[%c0_92, %c0_93] : memref<5x8xbf16, #tpu.memory_space<vmem>>, vector<5x8xbf16>
    tpu.vector_store %arg34[%c0_92, %c0_93], %130 {strides = array<i32>} : memref<5x8xbf16, #tpu.memory_space<vmem>>, vector<5x8xbf16>,
    return
  }
  func.func @transform_0(%arg0: i32) -> (i32, i32) {
    %c0_i32 = arith.constant 0 : i32
    %c0_i32_0 = arith.constant 0 : i32
    %c0_i32_1 = arith.constant 0 : i32
    return %c0_i32, %c0_i32_0 : i32, i32
  }
  func.func @transform_1(%arg0: i32) -> (i32, i32) {
    %c0_i32 = arith.constant 0 : i32
    %c0_i32_0 = arith.constant 0 : i32
    %c0_i32_1 = arith.constant 0 : i32
    return %c0_i32, %c0_i32_0 : i32, i32
  }
  func.func @transform_2(%arg0: i32) -> (i32, i32) {
    %c0_i32 = arith.constant 0 : i32
    %c0_i32_0 = arith.constant 0 : i32
    %c0_i32_1 = arith.constant 0 : i32
    return %c0_i32, %c0_i32_0 : i32, i32
  }
  func.func @transform_3(%arg0: i32) -> (i32, i32) {
    %c0_i32 = arith.constant 0 : i32
    %c0_i32_0 = arith.constant 0 : i32
    %c0_i32_1 = arith.constant 0 : i32
    return %c0_i32, %c0_i32_0 : i32, i32
  }
  func.func @transform_4(%arg0: i32) -> (i32, i32) {
    %c0_i32 = arith.constant 0 : i32
    %c0_i32_0 = arith.constant 0 : i32
    %c0_i32_1 = arith.constant 0 : i32
    return %c0_i32, %c0_i32_0 : i32, i32
  }
  func.func @transform_5(%arg0: i32) -> (i32, i32) {
    %c0_i32 = arith.constant 0 : i32
    %c0_i32_0 = arith.constant 0 : i32
    %c0_i32_1 = arith.constant 0 : i32
    return %c0_i32, %c0_i32_0 : i32, i32
  }
  func.func @transform_6(%arg0: i32) -> (i32, i32) {
    %c0_i32 = arith.constant 0 : i32
    %c0_i32_0 = arith.constant 0 : i32
    %c0_i32_1 = arith.constant 0 : i32
    return %c0_i32, %c0_i32_0 : i32, i32
  }
  func.func @transform_7(%arg0: i32) -> (i32, i32) {
    %c0_i32 = arith.constant 0 : i32
    %c0_i32_0 = arith.constant 0 : i32
    %c0_i32_1 = arith.constant 0 : i32
    return %c0_i32, %c0_i32_0 : i32, i32
  }
  func.func @transform_8(%arg0: i32) -> (i32, i32) {
    %c0_i32 = arith.constant 0 : i32
    %c0_i32_0 = arith.constant 0 : i32
    %c0_i32_1 = arith.constant 0 : i32
    return %c0_i32, %c0_i32_0 : i32, i32
  }
  func.func @transform_9(%arg0: i32) -> (i32, i32) {
    %c0_i32 = arith.constant 0 : i32
    %c0_i32_0 = arith.constant 0 : i32
    %c0_i32_1 = arith.constant 0 : i32
    return %c0_i32, %c0_i32_0 : i32, i32
  }
  func.func @transform_10(%arg0: i32) -> (i32, i32) {
    %c0_i32 = arith.constant 0 : i32
    %c0_i32_0 = arith.constant 0 : i32
    %c0_i32_1 = arith.constant 0 : i32
    return %c0_i32, %c0_i32_0 : i32, i32
  }
  func.func @transform_11(%arg0: i32) -> (i32, i32) {
    %c0_i32 = arith.constant 0 : i32
    %c0_i32_0 = arith.constant 0 : i32
    %c0_i32_1 = arith.constant 0 : i32
    return %c0_i32, %c0_i32_0 : i32, i32
  }
  func.func @transform_12(%arg0: i32) -> (i32, i32) {
    %c0_i32 = arith.constant 0 : i32
    %c0_i32_0 = arith.constant 0 : i32
    %c0_i32_1 = arith.constant 0 : i32
    return %c0_i32, %c0_i32_0 : i32, i32
  }
  func.func @transform_13(%arg0: i32) -> (i32, i32) {
    %c0_i32 = arith.constant 0 : i32
    %c0_i32_0 = arith.constant 0 : i32
    %c0_i32_1 = arith.constant 0 : i32
    return %c0_i32, %c0_i32_0 : i32, i32
  }
  func.func @transform_14(%arg0: i32) -> (i32, i32) {
    %c0_i32 = arith.constant 0 : i32
    %c0_i32_0 = arith.constant 0 : i32
    %c0_i32_1 = arith.constant 0 : i32
    return %c0_i32, %c0_i32_0 : i32, i32
  }
  func.func @transform_15(%arg0: i32) -> (i32, i32) {
    %c0_i32 = arith.constant 0 : i32
    %c0_i32_0 = arith.constant 0 : i32
    %c0_i32_1 = arith.constant 0 : i32
    return %c0_i32, %c0_i32_0 : i32, i32
  }
  func.func @transform_16(%arg0: i32) -> (i32, i32) {
    %c0_i32 = arith.constant 0 : i32
    %c0_i32_0 = arith.constant 0 : i32
    %c0_i32_1 = arith.constant 0 : i32
    return %c0_i32, %c0_i32_0 : i32, i32
  }
  func.func @transform_17(%arg0: i32) -> (i32, i32) {
    %c0_i32 = arith.constant 0 : i32
    %c0_i32_0 = arith.constant 0 : i32
    %c0_i32_1 = arith.constant 0 : i32
    return %c0_i32, %c0_i32_0 : i32, i32
  }
  func.func @transform_18(%arg0: i32) -> (i32, i32) {
    %c0_i32 = arith.constant 0 : i32
    %c0_i32_0 = arith.constant 0 : i32
    %c0_i32_1 = arith.constant 0 : i32
    return %c0_i32, %c0_i32_0 : i32, i32
  }
  func.func @transform_19(%arg0: i32) -> (i32, i32) {
    %c0_i32 = arith.constant 0 : i32
    %c0_i32_0 = arith.constant 0 : i32
    %c0_i32_1 = arith.constant 0 : i32
    return %c0_i32, %c0_i32_0 : i32, i32
  }
  func.func @transform_20(%arg0: i32) -> (i32, i32) {
    %c0_i32 = arith.constant 0 : i32
    %c0_i32_0 = arith.constant 0 : i32
    %c0_i32_1 = arith.constant 0 : i32
    return %c0_i32, %c0_i32_0 : i32, i32
  }
  func.func @transform_21(%arg0: i32) -> (i32, i32) {
    %c0_i32 = arith.constant 0 : i32
    %c0_i32_0 = arith.constant 0 : i32
    %c0_i32_1 = arith.constant 0 : i32
    return %c0_i32, %c0_i32_0 : i32, i32
  }
  func.func @transform_22(%arg0: i32) -> (i32, i32) {
    %c0_i32 = arith.constant 0 : i32
    %c0_i32_0 = arith.constant 0 : i32
    %c0_i32_1 = arith.constant 0 : i32
    return %c0_i32, %c0_i32_0 : i32, i32
  }
  func.func @transform_23(%arg0: i32) -> (i32, i32) {
    %c0_i32 = arith.constant 0 : i32
    %c0_i32_0 = arith.constant 0 : i32
    %c0_i32_1 = arith.constant 0 : i32
    return %c0_i32, %c0_i32_0 : i32, i32
  }
  func.func @transform_24(%arg0: i32) -> (i32, i32) {
    %c0_i32 = arith.constant 0 : i32
    %c0_i32_0 = arith.constant 0 : i32
    %c0_i32_1 = arith.constant 0 : i32
    return %c0_i32, %c0_i32_0 : i32, i32
  }
  func.func @transform_25(%arg0: i32) -> (i32, i32) {
    %c0_i32 = arith.constant 0 : i32
    %c0_i32_0 = arith.constant 0 : i32
    %c0_i32_1 = arith.constant 0 : i32
    return %c0_i32, %c0_i32_0 : i32, i32
  }
  func.func @transform_26(%arg0: i32) -> (i32, i32) {
    %c0_i32 = arith.constant 0 : i32
    %c0_i32_0 = arith.constant 0 : i32
    %c0_i32_1 = arith.constant 0 : i32
    return %c0_i32, %c0_i32_0 : i32, i32
  }
  func.func @transform_27(%arg0: i32) -> (i32, i32) {
    %c0_i32 = arith.constant 0 : i32
    %c0_i32_0 = arith.constant 0 : i32
    %c0_i32_1 = arith.constant 0 : i32
    return %c0_i32, %c0_i32_0 : i32, i32
  }
  func.func @transform_28(%arg0: i32) -> (i32, i32) {
    %c0_i32 = arith.constant 0 : i32
    %c0_i32_0 = arith.constant 0 : i32
    %c0_i32_1 = arith.constant 0 : i32
    return %c0_i32, %c0_i32_0 : i32, i32
  }
  func.func @transform_29(%arg0: i32) -> (i32, i32) {
    %c0_i32 = arith.constant 0 : i32
    %c0_i32_0 = arith.constant 0 : i32
    %c0_i32_1 = arith.constant 0 : i32
    return %c0_i32, %c0_i32_0 : i32, i32
  }
  func.func @transform_30(%arg0: i32) -> (i32, i32) {
    %c0_i32 = arith.constant 0 : i32
    %c0_i32_0 = arith.constant 0 : i32
    %c0_i32_1 = arith.constant 0 : i32
    return %c0_i32, %c0_i32_0 : i32, i32
  }
  func.func @transform_31(%arg0: i32) -> (i32, i32) {
    %c0_i32 = arith.constant 0 : i32
    %c0_i32_0 = arith.constant 0 : i32
    %c0_i32_1 = arith.constant 0 : i32
    return %c0_i32, %c0_i32_0 : i32, i32
  }
  func.func @transform_32(%arg0: i32) -> (i32, i32) {
    %c0_i32 = arith.constant 0 : i32
    %c0_i32_0 = arith.constant 0 : i32
    %c0_i32_1 = arith.constant 0 : i32
    return %c0_i32, %c0_i32_0 : i32, i32
  }
  func.func @transform_33(%arg0: i32) -> (i32, i32) {
    %c0_i32 = arith.constant 0 : i32
    %c0_i32_0 = arith.constant 0 : i32
    %c0_i32_1 = arith.constant 0 : i32
    return %c0_i32, %c0_i32_0 : i32, i32
  }
}

</mosaic_0001>

<llo_original>
// kernel: forward.1
$region0: #{forward.1}
  #allocation0 [shape = 'u32[]', space=smem, size = 0x4, offset = 0x4, fixed_abs, tag = 'smem constant byte address 0x4 - core index']
  #allocation1 [shape = 'u32[72,128]{1,0:T(1,128)}', space=vmem, size = 0x9000, scoped, tag = 'internal scratch']
  %s0 = inlined_call_operand.smem [shape: u32[34], index: -1, kind: input, shape index: {}]
  %s1 = sld [smem:[%s0]]
  %s2 = scalar_lea.smem %s0, 1
  %s3 = sld [smem:[%s2]]
  %s4 = scalar_lea.smem %s0, 2
  %s5 = sld [smem:[%s4]]
  %s6 = scalar_lea.smem %s0, 3
  %s7 = sld [smem:[%s6]]
  %s8 = scalar_lea.smem %s0, 4
  %s9 = sld [smem:[%s8]]
  %s10 = scalar_lea.smem %s0, 5
  %s11 = sld [smem:[%s10]]
  %s12 = scalar_lea.smem %s0, 6
  %s13 = sld [smem:[%s12]]
  %s14 = scalar_lea.smem %s0, 7
  %s15 = sld [smem:[%s14]]
  %s16 = scalar_lea.smem %s0, 8
  %s17 = sld [smem:[%s16]]
  %s18 = scalar_lea.smem %s0, 9
  %s19 = sld [smem:[%s18]]
  %s20 = scalar_lea.smem %s0, 10
  %s21 = sld [smem:[%s20]]
  %s22 = scalar_lea.smem %s0, 11
  %s23 = sld [smem:[%s22]]
  %s24 = scalar_lea.smem %s0, 12
  %s25 = sld [smem:[%s24]]
  %s26 = scalar_lea.smem %s0, 13
  %s27 = sld [smem:[%s26]]
  %s28 = scalar_lea.smem %s0, 14
  %s29 = sld [smem:[%s28]]
  %s30 = scalar_lea.smem %s0, 15
  %s31 = sld [smem:[%s30]]
  %s32 = scalar_lea.smem %s0, 16
  %s33 = sld [smem:[%s32]]
  %s34 = scalar_lea.smem %s0, 17
  %s35 = sld [smem:[%s34]]
  %s36 = scalar_lea.smem %s0, 18
  %s37 = sld [smem:[%s36]]
  %s38 = scalar_lea.smem %s0, 19
  %s39 = sld [smem:[%s38]]
  %s40 = scalar_lea.smem %s0, 20
  %s41 = sld [smem:[%s40]]
  %s42 = scalar_lea.smem %s0, 21
  %s43 = sld [smem:[%s42]]
  %s44 = scalar_lea.smem %s0, 22
  %s45 = sld [smem:[%s44]]
  %s46 = scalar_lea.smem %s0, 23
  %s47 = sld [smem:[%s46]]
  %s48 = scalar_lea.smem %s0, 24
  %s49 = sld [smem:[%s48]]
  %s50 = scalar_lea.smem %s0, 25
  %s51 = sld [smem:[%s50]]
  %s52 = scalar_lea.smem %s0, 26
  %s53 = sld [smem:[%s52]]
  %s54 = scalar_lea.smem %s0, 27
  %s55 = sld [smem:[%s54]]
  %s56 = scalar_lea.smem %s0, 28
  %s57 = sld [smem:[%s56]]
  %s58 = scalar_lea.smem %s0, 29
  %s59 = sld [smem:[%s58]]
  %s60 = scalar_lea.smem %s0, 30
  %s61 = sld [smem:[%s60]]
  %s62 = scalar_lea.smem %s0, 31
  %s63 = sld [smem:[%s62]]
  %s64 = scalar_lea.smem %s0, 32
  %s65 = sld [smem:[%s64]]
  %s66 = scalar_lea.smem %s0, 33
  %s67 = sld [smem:[%s66]]
  %68 = xla_tuple %s53, %s55, %s57, %s59, %s61, %s63, %s65, %s67
  %s69 = sld [smem:[#allocation0]]
  $region170: #{forward.1} parent=0
    _
  %s71 = ssub.s32 1, %s69
  %s72 = scalar_select 0, %s71, %s69
  // Predicated region
  $region2: #{forward.1} parent=0 // pred_check
    _
  $region3: #{forward.1} parent=0 // pred_check_branch
    %74 = sbr.rel (0) target = $region5
  $region4: #{forward.1} parent=0 // pred_region
    _
  $region5: #{forward.1} parent=0 // pred_fallthru
    _
  // Predicated region
  $region6: #{forward.1} parent=0 // pred_check
    _
  $region7: #{forward.1} parent=0 // pred_check_branch
    %76 = sbr.rel (0) target = $region9
  $region8: #{forward.1} parent=0 // pred_region
    _
  $region9: #{forward.1} parent=0 // pred_fallthru
    _
  // Predicated region
  $region10: #{forward.1} parent=0 // pred_check
    _
  $region11: #{forward.1} parent=0 // pred_check_branch
    %78 = sbr.rel (0) target = $region13
  $region12: #{forward.1} parent=0 // pred_region
    _
  $region13: #{forward.1} parent=0 // pred_fallthru
    _
  // Predicated region
  $region14: #{forward.1} parent=0 // pred_check
    _
  $region15: #{forward.1} parent=0 // pred_check_branch
    %80 = sbr.rel (0) target = $region17
  $region16: #{forward.1} parent=0 // pred_region
    _
  $region17: #{forward.1} parent=0 // pred_fallthru
    _
  // Predicated region
  $region18: #{forward.1} parent=0 // pred_check
    _
  $region19: #{forward.1} parent=0 // pred_check_branch
    %82 = sbr.rel (0) target = $region21
  $region20: #{forward.1} parent=0 // pred_region
    _
  $region21: #{forward.1} parent=0 // pred_fallthru
    _
  // Predicated region
  $region22: #{forward.1} parent=0 // pred_check
    _
  $region23: #{forward.1} parent=0 // pred_check_branch
    %84 = sbr.rel (0) target = $region25
  $region24: #{forward.1} parent=0 // pred_region
    _
  $region25: #{forward.1} parent=0 // pred_fallthru
    _
  // Predicated region
  $region26: #{forward.1} parent=0 // pred_check
    _
  $region27: #{forward.1} parent=0 // pred_check_branch
    %86 = sbr.rel (0) target = $region29
  $region28: #{forward.1} parent=0 // pred_region
    _
  $region29: #{forward.1} parent=0 // pred_fallthru
    _
  // Predicated region
  $region30: #{forward.1} parent=0 // pred_check
    _
  $region31: #{forward.1} parent=0 // pred_check_branch
    %88 = sbr.rel (0) target = $region33
  $region32: #{forward.1} parent=0 // pred_region
    _
  $region33: #{forward.1} parent=0 // pred_fallthru
    _
  // Predicated region
  $region34: #{forward.1} parent=0 // pred_check
    _
  $region35: #{forward.1} parent=0 // pred_check_branch
    %90 = sbr.rel (0) target = $region37
  $region36: #{forward.1} parent=0 // pred_region
    _
  $region37: #{forward.1} parent=0 // pred_fallthru
    _
  // Predicated region
  $region38: #{forward.1} parent=0 // pred_check
    _
  $region39: #{forward.1} parent=0 // pred_check_branch
    %92 = sbr.rel (0) target = $region41
  $region40: #{forward.1} parent=0 // pred_region
    _
  $region41: #{forward.1} parent=0 // pred_fallthru
    _
  // Predicated region
  $region42: #{forward.1} parent=0 // pred_check
    _
  $region43: #{forward.1} parent=0 // pred_check_branch
    %94 = sbr.rel (0) target = $region45
  $region44: #{forward.1} parent=0 // pred_region
    _
  $region45: #{forward.1} parent=0 // pred_fallthru
    _
  // Predicated region
  $region46: #{forward.1} parent=0 // pred_check
    _
  $region47: #{forward.1} parent=0 // pred_check_branch
    %96 = sbr.rel (0) target = $region49
  $region48: #{forward.1} parent=0 // pred_region
    _
  $region49: #{forward.1} parent=0 // pred_fallthru
    _
  // Predicated region
  $region50: #{forward.1} parent=0 // pred_check
    _
  $region51: #{forward.1} parent=0 // pred_check_branch
    %98 = sbr.rel (0) target = $region53
  $region52: #{forward.1} parent=0 // pred_region
    _
  $region53: #{forward.1} parent=0 // pred_fallthru
    _
  // Predicated region
  $region54: #{forward.1} parent=0 // pred_check
    _
  $region55: #{forward.1} parent=0 // pred_check_branch
    %100 = sbr.rel (0) target = $region57
  $region56: #{forward.1} parent=0 // pred_region
    _
  $region57: #{forward.1} parent=0 // pred_fallthru
    _
  // Predicated region
  $region58: #{forward.1} parent=0 // pred_check
    _
  $region59: #{forward.1} parent=0 // pred_check_branch
    %102 = sbr.rel (0) target = $region61
  $region60: #{forward.1} parent=0 // pred_region
    _
  $region61: #{forward.1} parent=0 // pred_fallthru
    _
  // Predicated region
  $region62: #{forward.1} parent=0 // pred_check
    _
  $region63: #{forward.1} parent=0 // pred_check_branch
    %104 = sbr.rel (0) target = $region65
  $region64: #{forward.1} parent=0 // pred_region
    _
  $region65: #{forward.1} parent=0 // pred_fallthru
    _
  // Predicated region
  $region66: #{forward.1} parent=0 // pred_check
    _
  $region67: #{forward.1} parent=0 // pred_check_branch
    %106 = sbr.rel (0) target = $region69
  $region68: #{forward.1} parent=0 // pred_region
    _
  $region69: #{forward.1} parent=0 // pred_fallthru
    _
  // Predicated region
  $region70: #{forward.1} parent=0 // pred_check
    _
  $region71: #{forward.1} parent=0 // pred_check_branch
    %108 = sbr.rel (0) target = $region73
  $region72: #{forward.1} parent=0 // pred_region
    _
  $region73: #{forward.1} parent=0 // pred_fallthru
    _
  // Predicated region
  $region74: #{forward.1} parent=0 // pred_check
    _
  $region75: #{forward.1} parent=0 // pred_check_branch
    %110 = sbr.rel (0) target = $region77
  $region76: #{forward.1} parent=0 // pred_region
    _
  $region77: #{forward.1} parent=0 // pred_fallthru
    _
  // Predicated region
  $region78: #{forward.1} parent=0 // pred_check
    _
  $region79: #{forward.1} parent=0 // pred_check_branch
    %112 = sbr.rel (0) target = $region81
  $region80: #{forward.1} parent=0 // pred_region
    _
  $region81: #{forward.1} parent=0 // pred_fallthru
    _
  // Predicated region
  $region82: #{forward.1} parent=0 // pred_check
    _
  $region83: #{forward.1} parent=0 // pred_check_branch
    %114 = sbr.rel (0) target = $region85
  $region84: #{forward.1} parent=0 // pred_region
    _
  $region85: #{forward.1} parent=0 // pred_fallthru
    _
  // Predicated region
  $region86: #{forward.1} parent=0 // pred_check
    _
  $region87: #{forward.1} parent=0 // pred_check_branch
    %116 = sbr.rel (0) target = $region89
  $region88: #{forward.1} parent=0 // pred_region
    _
  $region89: #{forward.1} parent=0 // pred_fallthru
    _
  // Predicated region
  $region90: #{forward.1} parent=0 // pred_check
    _
  $region91: #{forward.1} parent=0 // pred_check_branch
    %118 = sbr.rel (0) target = $region93
  $region92: #{forward.1} parent=0 // pred_region
    _
  $region93: #{forward.1} parent=0 // pred_fallthru
    _
  // Predicated region
  $region94: #{forward.1} parent=0 // pred_check
    _
  $region95: #{forward.1} parent=0 // pred_check_branch
    %120 = sbr.rel (0) target = $region97
  $region96: #{forward.1} parent=0 // pred_region
    _
  $region97: #{forward.1} parent=0 // pred_fallthru
    _
  // Predicated region
  $region98: #{forward.1} parent=0 // pred_check
    _
  $region99: #{forward.1} parent=0 // pred_check_branch
    %122 = sbr.rel (0) target = $region101
  $region100: #{forward.1} parent=0 // pred_region
    _
  $region101: #{forward.1} parent=0 // pred_fallthru
    _
  // Predicated region
  $region102: #{forward.1} parent=0 // pred_check
    _
  $region103: #{forward.1} parent=0 // pred_check_branch
    %124 = sbr.rel (0) target = $region105
  $region104: #{forward.1} parent=0 // pred_region
    _
  $region105: #{forward.1} parent=0 // pred_fallthru
    _
  %v126 = vld [vmem:[%s3] sm:$0x3]
  %v127 = vld [vmem:[%s1] sm:$0xff]
  %v128 = vld [vmem:[%s5] sm:$0x7]
  %130 = vset.pattern.permute.xlu0 0
  %131 = vperm.xlu0 %130, %v128
  %v132 = vpop.permute.xlu0 %131
  %135 = vst [vmem:[#allocation1] ss:$4 sm:$0xff] %v127
  %v136 = vld.sshfl [vmem:[#allocation1] sm:$0xff pattern:$0x73625140]
  %v137 = vld.sshfl [vmem:[#allocation1 + $0x8] sm:$0xff pattern:$0x73625140]
  %v138 = vld.sshfl [vmem:[#allocation1 + $0x10] sm:$0xff pattern:$0x73625140]
  %v139 = vld.sshfl [vmem:[#allocation1 + $0x18] sm:$0xff pattern:$0x73625140]
  %vm140 = vcmask 31744
  %v142 = vsel %vm140, %v126, 0
  %vm144 = vcmask 1041408
  %v145 = vsel %vm144, %v136, 0
  %v147 = vsel %vm144, %v137, 0
  %v149 = vsel %vm144, %v138, 0
  %v151 = vsel %vm144, %v139, 0
  %153 = vmatpush.bf16.msra.mxu0 0
  %154 = vmatpush.bf16.msra.mxu0 0
  %155 = vmatpush.bf16.msra.mxu0 0
  %156 = vmatpush.bf16.msra.mxu0 0
  %157 = vmatpush.bf16.msra.mxu0 0
  %158 = vmatpush.bf16.msra.mxu0 0
  %159 = vmatpush.bf16.msra.mxu0 0
  %160 = vmatpush.bf16.msra.mxu0 %v145
  %161 = vmatmul.bf16.gmra.mxu0 %v142
  %v162 = vpop.f32.mrf.mxu0
  %v163 = vadd.f32 %v132, %v162
  %v164 = vpop.f32.mrf.mxu0
  %165 = vdwg.mxu0
  %166 = vmatpush.bf16.msra.mxu0 0
  %167 = vmatpush.bf16.msra.mxu0 0
  %168 = vmatpush.bf16.msra.mxu0 0
  %169 = vmatpush.bf16.msra.mxu0 0
  %170 = vmatpush.bf16.msra.mxu0 0
  %171 = vmatpush.bf16.msra.mxu0 0
  %172 = vmatpush.bf16.msra.mxu0 0
  %173 = vmatpush.bf16.msra.mxu0 %v147
  %174 = vmatmul.bf16.gmra.mxu0 %v142
  %v175 = vpop.f32.mrf.mxu0
  %v176 = vadd.f32 %v132, %v175
  %v177 = vpop.f32.mrf.mxu0
  %178 = vdwg.mxu0
  %179 = vmatpush.bf16.msra.mxu0 0
  %180 = vmatpush.bf16.msra.mxu0 0
  %181 = vmatpush.bf16.msra.mxu0 0
  %182 = vmatpush.bf16.msra.mxu0 0
  %183 = vmatpush.bf16.msra.mxu0 0
  %184 = vmatpush.bf16.msra.mxu0 0
  %185 = vmatpush.bf16.msra.mxu0 0
  %186 = vmatpush.bf16.msra.mxu0 %v149
  %187 = vmatmul.bf16.gmra.mxu0 %v142
  %v188 = vpop.f32.mrf.mxu0
  %v189 = vadd.f32 %v132, %v188
  %v190 = vpop.f32.mrf.mxu0
  %191 = vdwg.mxu0
  %192 = vmatpush.bf16.msra.mxu0 0
  %193 = vmatpush.bf16.msra.mxu0 0
  %194 = vmatpush.bf16.msra.mxu0 0
  %195 = vmatpush.bf16.msra.mxu0 0
  %196 = vmatpush.bf16.msra.mxu0 0
  %197 = vmatpush.bf16.msra.mxu0 0
  %198 = vmatpush.bf16.msra.mxu0 0
  %199 = vmatpush.bf16.msra.mxu0 %v151
  %200 = vmatmul.bf16.gmra.mxu0 %v142
  %v201 = vpop.f32.mrf.mxu0
  %v202 = vadd.f32 %v132, %v201
  %v203 = vpop.f32.mrf.mxu0
  %204 = vdwg.mxu0
  %v205 = vpack.c.bf16 %v163, %v163
  %v206 = vpack.c.bf16 %v176, %v176
  %v207 = vpack.c.bf16 %v189, %v189
  %v208 = vpack.c.bf16 %v202, %v202
  %v209 = vld [vmem:[%s7] sm:$0xf]
  %v210 = vld [vmem:[%s7 + $0x4] sm:$0xf]
  %v211 = vld [vmem:[%s7 + $0x8] sm:$0xf]
  %v212 = vld [vmem:[%s7 + $0xc] sm:$0xf]
  %v213 = vld [vmem:[%s7 + $0x10] sm:$0xf]
  %v214 = vld [vmem:[%s7 + $0x14] sm:$0xf]
  %v215 = vld [vmem:[%s7 + $0x18] sm:$0xf]
  %v216 = vld [vmem:[%s7 + $0x1c] sm:$0xf]
  %v217 = vld [vmem:[%s7 + $0x20] sm:$0xf]
  %v218 = vld [vmem:[%s7 + $0x24] sm:$0xf]
  %v219 = vld [vmem:[%s7 + $0x28] sm:$0xf]
  %v220 = vld [vmem:[%s7 + $0x2c] sm:$0xf]
  %v221 = vld [vmem:[%s7 + $0x30] sm:$0xf]
  %v222 = vld [vmem:[%s7 + $0x34] sm:$0xf]
  %v223 = vld [vmem:[%s7 + $0x38] sm:$0xf]
  %v224 = vld [vmem:[%s7 + $0x3c] sm:$0xf]
  %v225 = vld [vmem:[%s7 + $0x40] sm:$0xf]
  %v226 = vld [vmem:[%s7 + $0x44] sm:$0xf]
  %v227 = vld [vmem:[%s7 + $0x48] sm:$0xf]
  %v228 = vld [vmem:[%s7 + $0x4c] sm:$0xf]
  %v229 = vld [vmem:[%s7 + $0x50] sm:$0xf]
  %v230 = vld [vmem:[%s7 + $0x54] sm:$0xf]
  %v231 = vld [vmem:[%s7 + $0x58] sm:$0xf]
  %v232 = vld [vmem:[%s7 + $0x5c] sm:$0xf]
  %v233 = vld [vmem:[%s7 + $0x60] sm:$0xf]
  %v234 = vld [vmem:[%s7 + $0x64] sm:$0xf]
  %v235 = vld [vmem:[%s7 + $0x68] sm:$0xf]
  %v236 = vld [vmem:[%s7 + $0x6c] sm:$0xf]
  %v237 = vld [vmem:[%s7 + $0x70] sm:$0xf]
  %v238 = vld [vmem:[%s7 + $0x74] sm:$0xf]
  %v239 = vld [vmem:[%s7 + $0x78] sm:$0xf]
  %v240 = vld [vmem:[%s7 + $0x7c] sm:$0xf]
  %v241 = vld [vmem:[%s7 + $0x80] sm:$0xf]
  %v242 = vld [vmem:[%s7 + $0x84] sm:$0xf]
  %v243 = vld [vmem:[%s7 + $0x88] sm:$0xf]
  %v244 = vld [vmem:[%s7 + $0x8c] sm:$0xf]
  %v245 = vld [vmem:[%s7 + $0x90] sm:$0xf]
  %v246 = vld [vmem:[%s7 + $0x94] sm:$0xf]
  %v247 = vld [vmem:[%s7 + $0x98] sm:$0xf]
  %v248 = vld [vmem:[%s7 + $0x9c] sm:$0xf]
  %v249 = vld [vmem:[%s7 + $0xa0] sm:$0xf]
  %v250 = vld [vmem:[%s7 + $0xa4] sm:$0xf]
  %v251 = vld [vmem:[%s7 + $0xa8] sm:$0xf]
  %v252 = vld [vmem:[%s7 + $0xac] sm:$0xf]
  %v253 = vld [vmem:[%s7 + $0xb0] sm:$0xf]
  %v254 = vld [vmem:[%s7 + $0xb4] sm:$0xf]
  %v255 = vld [vmem:[%s7 + $0xb8] sm:$0xf]
  %v256 = vld [vmem:[%s7 + $0xbc] sm:$0xf]
  %v257 = vld [vmem:[%s7 + $0xc0] sm:$0xf]
  %v258 = vld [vmem:[%s7 + $0xc4] sm:$0xf]
  %v259 = vld [vmem:[%s7 + $0xc8] sm:$0xf]
  %v260 = vld [vmem:[%s7 + $0xcc] sm:$0xf]
  %v261 = vld [vmem:[%s7 + $0xd0] sm:$0xf]
  %v262 = vld [vmem:[%s7 + $0xd4] sm:$0xf]
  %v263 = vld [vmem:[%s7 + $0xd8] sm:$0xf]
  %v264 = vld [vmem:[%s7 + $0xdc] sm:$0xf]
  %v265 = vld [vmem:[%s7 + $0xe0] sm:$0xf]
  %v266 = vld [vmem:[%s7 + $0xe4] sm:$0xf]
  %v267 = vld [vmem:[%s7 + $0xe8] sm:$0xf]
  %v268 = vld [vmem:[%s7 + $0xec] sm:$0xf]
  %v269 = vld [vmem:[%s7 + $0xf0] sm:$0xf]
  %v270 = vld [vmem:[%s7 + $0xf4] sm:$0xf]
  %v271 = vld [vmem:[%s7 + $0xf8] sm:$0xf]
  %v272 = vld [vmem:[%s7 + $0xfc] sm:$0xf]
  %v337 = vunpack.c.l.b16 %v209
  %v338 = vunpack.c.l.b16 %v210
  %v339 = vunpack.c.l.b16 %v211
  %v340 = vunpack.c.l.b16 %v212
  %v341 = vunpack.c.l.b16 %v213
  %v342 = vunpack.c.l.b16 %v214
  %v343 = vunpack.c.l.b16 %v215
  %v344 = vunpack.c.l.b16 %v216
  %v345 = vunpack.c.l.b16 %v217
  %v346 = vunpack.c.l.b16 %v218
  %v347 = vunpack.c.l.b16 %v219
  %v348 = vunpack.c.l.b16 %v220
  %v349 = vunpack.c.l.b16 %v221
  %v350 = vunpack.c.l.b16 %v222
  %v351 = vunpack.c.l.b16 %v223
  %v352 = vunpack.c.l.b16 %v224
  %v353 = vunpack.c.l.b16 %v225
  %v354 = vunpack.c.l.b16 %v226
  %v355 = vunpack.c.l.b16 %v227
  %v356 = vunpack.c.l.b16 %v228
  %v357 = vunpack.c.l.b16 %v229
  %v358 = vunpack.c.l.b16 %v230
  %v359 = vunpack.c.l.b16 %v231
  %v360 = vunpack.c.l.b16 %v232
  %v361 = vunpack.c.l.b16 %v233
  %v362 = vunpack.c.l.b16 %v234
  %v363 = vunpack.c.l.b16 %v235
  %v364 = vunpack.c.l.b16 %v236
  %v365 = vunpack.c.l.b16 %v237
  %v366 = vunpack.c.l.b16 %v238
  %v367 = vunpack.c.l.b16 %v239
  %v368 = vunpack.c.l.b16 %v240
  %v369 = vunpack.c.l.b16 %v241
  %v370 = vunpack.c.l.b16 %v242
  %v371 = vunpack.c.l.b16 %v243
  %v372 = vunpack.c.l.b16 %v244
  %v373 = vunpack.c.l.b16 %v245
  %v374 = vunpack.c.l.b16 %v246
  %v375 = vunpack.c.l.b16 %v247
  %v376 = vunpack.c.l.b16 %v248
  %v377 = vunpack.c.l.b16 %v249
  %v378 = vunpack.c.l.b16 %v250
  %v379 = vunpack.c.l.b16 %v251
  %v380 = vunpack.c.l.b16 %v252
  %v381 = vunpack.c.l.b16 %v253
  %v382 = vunpack.c.l.b16 %v254
  %v383 = vunpack.c.l.b16 %v255
  %v384 = vunpack.c.l.b16 %v256
  %v385 = vunpack.c.l.b16 %v257
  %v386 = vunpack.c.l.b16 %v258
  %v387 = vunpack.c.l.b16 %v259
  %v388 = vunpack.c.l.b16 %v260
  %v389 = vunpack.c.l.b16 %v261
  %v390 = vunpack.c.l.b16 %v262
  %v391 = vunpack.c.l.b16 %v263
  %v392 = vunpack.c.l.b16 %v264
  %v393 = vunpack.c.l.b16 %v265
  %v394 = vunpack.c.l.b16 %v266
  %v395 = vunpack.c.l.b16 %v267
  %v396 = vunpack.c.l.b16 %v268
  %v397 = vunpack.c.l.b16 %v269
  %v398 = vunpack.c.l.b16 %v270
  %v399 = vunpack.c.l.b16 %v271
  %v400 = vunpack.c.l.b16 %v272
  %v401 = vpack.c.b16 %v338, %v337
  %v402 = vpack.c.b16 %v340, %v339
  %v403 = vpack.c.b16 %v342, %v341
  %v404 = vpack.c.b16 %v344, %v343
  %v405 = vpack.c.b16 %v346, %v345
  %v406 = vpack.c.b16 %v348, %v347
  %v407 = vpack.c.b16 %v350, %v349
  %v408 = vpack.c.b16 %v352, %v351
  %v409 = vpack.c.b16 %v354, %v353
  %v410 = vpack.c.b16 %v356, %v355
  %v411 = vpack.c.b16 %v358, %v357
  %v412 = vpack.c.b16 %v360, %v359
  %v413 = vpack.c.b16 %v362, %v361
  %v414 = vpack.c.b16 %v364, %v363
  %v415 = vpack.c.b16 %v366, %v365
  %v416 = vpack.c.b16 %v368, %v367
  %v417 = vpack.c.b16 %v370, %v369
  %v418 = vpack.c.b16 %v372, %v371
  %v419 = vpack.c.b16 %v374, %v373
  %v420 = vpack.c.b16 %v376, %v375
  %v421 = vpack.c.b16 %v378, %v377
  %v422 = vpack.c.b16 %v380, %v379
  %v423 = vpack.c.b16 %v382, %v381
  %v424 = vpack.c.b16 %v384, %v383
  %v425 = vpack.c.b16 %v386, %v385
  %v426 = vpack.c.b16 %v388, %v387
  %v427 = vpack.c.b16 %v390, %v389
  %v428 = vpack.c.b16 %v392, %v391
  %v429 = vpack.c.b16 %v394, %v393
  %v430 = vpack.c.b16 %v396, %v395
  %v431 = vpack.c.b16 %v398, %v397
  %v432 = vpack.c.b16 %v400, %v399
  %465 = vmatpush.bf16.msra.mxu0 %v408
  %466 = vmatpush.bf16.msra.mxu0 %v407
  %467 = vmatpush.bf16.msra.mxu0 %v406
  %468 = vmatpush.bf16.msra.mxu0 %v405
  %469 = vmatpush.bf16.msra.mxu0 %v404
  %470 = vmatpush.bf16.msra.mxu0 %v403
  %471 = vmatpush.bf16.msra.mxu0 %v402
  %472 = vmatpush.bf16.msra.mxu0 %v401
  %473 = vmatmul.bf16.gmra.mxu0 %v205
  %v474 = vpop.f32.mrf.mxu0
  %v475 = vadd.f32 0.0, %v474
  %v476 = vpop.f32.mrf.mxu0
  %477 = vdwg.mxu0
  %478 = vmatpush.bf16.msra.mxu0 %v416
  %479 = vmatpush.bf16.msra.mxu0 %v415
  %480 = vmatpush.bf16.msra.mxu0 %v414
  %481 = vmatpush.bf16.msra.mxu0 %v413
  %482 = vmatpush.bf16.msra.mxu0 %v412
  %483 = vmatpush.bf16.msra.mxu0 %v411
  %484 = vmatpush.bf16.msra.mxu0 %v410
  %485 = vmatpush.bf16.msra.mxu0 %v409
  %486 = vmatmul.bf16.gmra.mxu0 %v206
  %v487 = vpop.f32.mrf.mxu0
  %v488 = vadd.f32 %v475, %v487
  %v489 = vpop.f32.mrf.mxu0
  %490 = vdwg.mxu0
  %491 = vmatpush.bf16.msra.mxu0 %v424
  %492 = vmatpush.bf16.msra.mxu0 %v423
  %493 = vmatpush.bf16.msra.mxu0 %v422
  %494 = vmatpush.bf16.msra.mxu0 %v421
  %495 = vmatpush.bf16.msra.mxu0 %v420
  %496 = vmatpush.bf16.msra.mxu0 %v419
  %497 = vmatpush.bf16.msra.mxu0 %v418
  %498 = vmatpush.bf16.msra.mxu0 %v417
  %499 = vmatmul.bf16.gmra.mxu0 %v207
  %v500 = vpop.f32.mrf.mxu0
  %v501 = vadd.f32 %v488, %v500
  %v502 = vpop.f32.mrf.mxu0
  %503 = vdwg.mxu0
  %504 = vmatpush.bf16.msra.mxu0 %v432
  %505 = vmatpush.bf16.msra.mxu0 %v431
  %506 = vmatpush.bf16.msra.mxu0 %v430
  %507 = vmatpush.bf16.msra.mxu0 %v429
  %508 = vmatpush.bf16.msra.mxu0 %v428
  %509 = vmatpush.bf16.msra.mxu0 %v427
  %510 = vmatpush.bf16.msra.mxu0 %v426
  %511 = vmatpush.bf16.msra.mxu0 %v425
  %512 = vmatmul.bf16.gmra.mxu0 %v208
  %v513 = vpop.f32.mrf.mxu0
  %v514 = vadd.f32 %v501, %v513
  %v515 = vpop.f32.mrf.mxu0
  %516 = vdwg.mxu0
  %v517 = vpack.c.bf16 %v514, %v514
  %v518 = vld [vmem:[%s9] sm:$0xf]
  %v519 = vld [vmem:[%s11] sm:$0xff]
  %521 = vset.pattern.permute.xlu0 0
  %522 = vperm.xlu0 %521, %v519
  %v523 = vpop.permute.xlu0 %522
  %vm525 = vcmask 23552
  %v527 = vsel %vm525, %v518, 0
  %vm529 = vcmask 1040384
  %v530 = vsel %vm529, 4294967295, 65535
  %v531 = vsel %vm144, %v530, 0
  %v533 = vand.u32 %v517, %v531
  %535 = vmatpush.bf16.msra.mxu0 0
  %536 = vmatpush.bf16.msra.mxu0 0
  %537 = vmatpush.bf16.msra.mxu0 0
  %538 = vmatpush.bf16.msra.mxu0 0
  %539 = vmatpush.bf16.msra.mxu0 0
  %540 = vmatpush.bf16.msra.mxu0 0
  %541 = vmatpush.bf16.msra.mxu0 0
  %542 = vmatpush.bf16.msra.mxu0 %v533
  %543 = vmatmul.bf16.gmra.mxu0 %v527
  %v544 = vpop.f32.mrf.mxu0
  %v545 = vadd.f32 %v523, %v544
  %v546 = vpop.f32.mrf.mxu0
  %547 = vdwg.mxu0
  %v548 = vmax.f32 %v545, 0.0
  %v549 = vpack.c.bf16 %v548, %v548
  %v550 = vld [vmem:[%s13] sm:$0x7]
  %v551 = vld [vmem:[%s15] sm:$0x1f]
  %553 = vset.pattern.permute.xlu0 0
  %554 = vperm.xlu0 %553, %v551
  %v555 = vpop.permute.xlu0 %554
  %vm557 = vcmask 64512
  %v559 = vsel %vm557, %v550, 0
  %vm561 = vcmask 1043456
  %v563 = vsel %vm561, %v549, 0
  %565 = vmatpush.bf16.msra.mxu0 0
  %566 = vmatpush.bf16.msra.mxu0 0
  %567 = vmatpush.bf16.msra.mxu0 0
  %568 = vmatpush.bf16.msra.mxu0 0
  %569 = vmatpush.bf16.msra.mxu0 0
  %570 = vmatpush.bf16.msra.mxu0 0
  %571 = vmatpush.bf16.msra.mxu0 0
  %572 = vmatpush.bf16.msra.mxu0 %v563
  %573 = vmatmul.bf16.gmra.mxu0 %v559
  %v574 = vpop.f32.mrf.mxu0
  %v575 = vadd.f32 %v555, %v574
  %v576 = vpop.f32.mrf.mxu0
  %577 = vdwg.mxu0
  %v578 = vpack.c.bf16 %v575, %v575
  %v579 = vld [vmem:[%s17] sm:$0xf]
  %v580 = vld [vmem:[%s17 + $0x4] sm:$0xf]
  %v581 = vld [vmem:[%s17 + $0x8] sm:$0xf]
  %v582 = vld [vmem:[%s17 + $0xc] sm:$0xf]
  %v583 = vld [vmem:[%s17 + $0x10] sm:$0xf]
  %v584 = vld [vmem:[%s17 + $0x14] sm:$0xf]
  %v585 = vld [vmem:[%s17 + $0x18] sm:$0xf]
  %v586 = vld [vmem:[%s17 + $0x1c] sm:$0xf]
  %v587 = vld [vmem:[%s17 + $0x20] sm:$0xf]
  %v588 = vld [vmem:[%s17 + $0x24] sm:$0xf]
  %v589 = vld [vmem:[%s17 + $0x28] sm:$0xf]
  %v590 = vld [vmem:[%s17 + $0x2c] sm:$0xf]
  %v591 = vld [vmem:[%s17 + $0x30] sm:$0xf]
  %v592 = vld [vmem:[%s17 + $0x34] sm:$0xf]
  %v593 = vld [vmem:[%s17 + $0x38] sm:$0xf]
  %v594 = vld [vmem:[%s17 + $0x3c] sm:$0xf]
  %v611 = vunpack.c.l.b16 %v579
  %v612 = vunpack.c.l.b16 %v580
  %v613 = vunpack.c.l.b16 %v581
  %v614 = vunpack.c.l.b16 %v582
  %v615 = vunpack.c.l.b16 %v583
  %v616 = vunpack.c.l.b16 %v584
  %v617 = vunpack.c.l.b16 %v585
  %v618 = vunpack.c.l.b16 %v586
  %v619 = vunpack.c.l.b16 %v587
  %v620 = vunpack.c.l.b16 %v588
  %v621 = vunpack.c.l.b16 %v589
  %v622 = vunpack.c.l.b16 %v590
  %v623 = vunpack.c.l.b16 %v591
  %v624 = vunpack.c.l.b16 %v592
  %v625 = vunpack.c.l.b16 %v593
  %v626 = vunpack.c.l.b16 %v594
  %v627 = vpack.c.b16 %v612, %v611
  %v628 = vpack.c.b16 %v614, %v613
  %v629 = vpack.c.b16 %v616, %v615
  %v630 = vpack.c.b16 %v618, %v617
  %v631 = vpack.c.b16 %v620, %v619
  %v632 = vpack.c.b16 %v622, %v621
  %v633 = vpack.c.b16 %v624, %v623
  %v634 = vpack.c.b16 %v626, %v625
  %643 = vmatpush.bf16.msra.mxu0 %v634
  %644 = vmatpush.bf16.msra.mxu0 %v633
  %645 = vmatpush.bf16.msra.mxu0 %v632
  %646 = vmatpush.bf16.msra.mxu0 %v631
  %647 = vmatpush.bf16.msra.mxu0 %v630
  %648 = vmatpush.bf16.msra.mxu0 %v629
  %649 = vmatpush.bf16.msra.mxu0 %v628
  %650 = vmatpush.bf16.msra.mxu0 %v627
  %651 = vmatmul.bf16.gmra.mxu0 %v578
  %v652 = vpop.f32.mrf.mxu0
  %v653 = vadd.f32 0.0, %v652
  %v654 = vpop.f32.mrf.mxu0
  %655 = vdwg.mxu0
  %v656 = vxor.u32 %v653, 2147483648
  %v657 = vmul.f32 %v656, 1.442695
  %v658 = vpow.pop %v657
  %v659 = vadd.f32 %v658, 1.0
  %v660 = vrcp.pop %v659
  %v661 = vmul.f32 %v659, %v660
  %v662 = vsub.f32 1.0, %v661
  %v663 = vmul.f32 %v660, %v662
  %v664 = vadd.f32 %v660, %v663
  %vm665 = vweird.f32 %v659
  %vm666 = vweird.f32 %v660
  %vm667 = vmor %vm665, %vm666
  %v668 = vsel %vm667, %v660, %v664
  %v669 = vand.u32 2147483647, %v659
  %vm670 = vcmp.eq.f32.partialorder %v669, 8.507059e+37
  %v671 = vand.u32 %v659, 2147483648
  %v672 = vor.u32 1.1754944e-38, %v671
  %v673 = vsel %vm670, %v672, %v668
  %v674 = vmul.f32 1.0, %v673
  %vm675 = vcmask 12288
  %676 = vst.msk [vmem:[%s53] sm:$0x1f] %vm675, %v674
  %v677 = vxor.u32 %v575, 2147483648
  %v678 = vmul.f32 %v677, 1.442695
  %v679 = vpow.pop %v678
  %v680 = vadd.f32 %v679, 1.0
  %v681 = vrcp.pop %v680
  %v682 = vmul.f32 %v680, %v681
  %v683 = vsub.f32 1.0, %v682
  %v684 = vmul.f32 %v681, %v683
  %v685 = vadd.f32 %v681, %v684
  %vm686 = vweird.f32 %v680
  %vm687 = vweird.f32 %v681
  %vm688 = vmor %vm686, %vm687
  %v689 = vsel %vm688, %v681, %v685
  %v690 = vand.u32 2147483647, %v680
  %vm691 = vcmp.eq.f32.partialorder %v690, 8.507059e+37
  %v692 = vand.u32 %v680, 2147483648
  %v693 = vor.u32 1.1754944e-38, %v692
  %v694 = vsel %vm691, %v693, %v689
  %v695 = vmul.f32 1.0, %v694
  %v696 = vpack.c.bf16 %v695, %v695
  %vm697 = vcmask 1042432
  %vm698 = vsmask.f32 2304
  %vm699 = vmand %vm697, %vm698
  %v700 = vld [vmem:[%s55] sm:$0x7]
  %v701 = vsel %vm699, %v696, %v700
  %702 = vst [vmem:[%s55] sm:$0x7] %v701
  %v703 = vld [vmem:[%s19] sm:$0xf]
  %v704 = vld [vmem:[%s19 + $0x4] sm:$0xf]
  %v705 = vld [vmem:[%s19 + $0x8] sm:$0xf]
  %v706 = vld [vmem:[%s19 + $0xc] sm:$0xf]
  %v707 = vld [vmem:[%s19 + $0x10] sm:$0xf]
  %v708 = vld [vmem:[%s19 + $0x14] sm:$0xf]
  %v709 = vld [vmem:[%s19 + $0x18] sm:$0xf]
  %v710 = vld [vmem:[%s19 + $0x1c] sm:$0xf]
  %v711 = vld [vmem:[%s19 + $0x20] sm:$0xf]
  %v712 = vld [vmem:[%s19 + $0x24] sm:$0xf]
  %v713 = vld [vmem:[%s19 + $0x28] sm:$0xf]
  %v714 = vld [vmem:[%s19 + $0x2c] sm:$0xf]
  %v715 = vld [vmem:[%s19 + $0x30] sm:$0xf]
  %v716 = vld [vmem:[%s19 + $0x34] sm:$0xf]
  %v717 = vld [vmem:[%s19 + $0x38] sm:$0xf]
  %v718 = vld [vmem:[%s19 + $0x3c] sm:$0xf]
  %v735 = vunpack.c.l.b16 %v703
  %v736 = vunpack.c.l.b16 %v704
  %v737 = vunpack.c.l.b16 %v705
  %v738 = vunpack.c.l.b16 %v706
  %v739 = vunpack.c.l.b16 %v707
  %v740 = vunpack.c.l.b16 %v708
  %v741 = vunpack.c.l.b16 %v709
  %v742 = vunpack.c.l.b16 %v710
  %v743 = vunpack.c.l.b16 %v711
  %v744 = vunpack.c.l.b16 %v712
  %v745 = vunpack.c.l.b16 %v713
  %v746 = vunpack.c.l.b16 %v714
  %v747 = vunpack.c.l.b16 %v715
  %v748 = vunpack.c.l.b16 %v716
  %v749 = vunpack.c.l.b16 %v717
  %v750 = vunpack.c.l.b16 %v718
  %v751 = vpack.c.b16 %v736, %v735
  %v752 = vpack.c.b16 %v738, %v737
  %v753 = vpack.c.b16 %v740, %v739
  %v754 = vpack.c.b16 %v742, %v741
  %v755 = vpack.c.b16 %v744, %v743
  %v756 = vpack.c.b16 %v746, %v745
  %v757 = vpack.c.b16 %v748, %v747
  %v758 = vpack.c.b16 %v750, %v749
  %767 = vmatpush.bf16.msra.mxu0 %v758
  %768 = vmatpush.bf16.msra.mxu0 %v757
  %769 = vmatpush.bf16.msra.mxu0 %v756
  %770 = vmatpush.bf16.msra.mxu0 %v755
  %771 = vmatpush.bf16.msra.mxu0 %v754
  %772 = vmatpush.bf16.msra.mxu0 %v753
  %773 = vmatpush.bf16.msra.mxu0 %v752
  %774 = vmatpush.bf16.msra.mxu0 %v751
  %775 = vmatmul.bf16.gmra.mxu0 %v549
  %v776 = vpop.f32.mrf.mxu0
  %v777 = vadd.f32 0.0, %v776
  %v778 = vpop.f32.mrf.mxu0
  %779 = vdwg.mxu0
  %v780 = vpack.c.bf16 %v777, %v777
  %v781 = vld [vmem:[%s21] sm:$0xf]
  %v782 = vld [vmem:[%s21 + $0x4] sm:$0xf]
  %v783 = vld [vmem:[%s23] sm:$0xff]
  %v784 = vld [vmem:[%s23 + $0x8] sm:$0xff]
  %786 = vset.pattern.permute.xlu0 0
  %787 = vperm.xlu0 %786, %v783
  %v788 = vpop.permute.xlu0 %787
  %791 = vset.pattern.permute.xlu0 0
  %792 = vperm.xlu0 %791, %v784
  %v793 = vpop.permute.xlu0 %792
  %v797 = vunpack.c.l.b16 %v781
  %v798 = vunpack.c.l.b16 %v782
  %v799 = vpack.c.b16 %v798, %v797
  %v801 = vsel %vm557, %v799, 0
  %v804 = vsel %vm561, %v780, 0
  %806 = vmatpush.bf16.msra.mxu0 0
  %807 = vmatpush.bf16.msra.mxu0 0
  %808 = vmatpush.bf16.msra.mxu0 0
  %809 = vmatpush.bf16.msra.mxu0 0
  %810 = vmatpush.bf16.msra.mxu0 0
  %811 = vmatpush.bf16.msra.mxu0 0
  %812 = vmatpush.bf16.msra.mxu0 0
  %813 = vmatpush.bf16.msra.mxu0 %v804
  %814 = vmatmul.bf16.gmra.mxu0 %v801
  %v815 = vpop.f32.mrf.mxu0
  %v816 = vadd.f32 %v788, %v815
  %v817 = vpop.f32.mrf.mxu0
  %v818 = vadd.f32 %v793, %v817
  %819 = vdwg.mxu0
  %v820 = vmax.f32 %v816, 0.0
  %v821 = vmax.f32 %v818, 0.0
  %v822 = vpack.c.bf16 %v821, %v820
  %v823 = vld [vmem:[%s25] sm:$0x7]
  %v824 = vld [vmem:[%s27] sm:$0x1f]
  %826 = vset.pattern.permute.xlu0 0
  %827 = vperm.xlu0 %826, %v824
  %v828 = vpop.permute.xlu0 %827
  %vm830 = vcmask 130048
  %v832 = vsel %vm830, %v823, 0
  %834 = vmatpush.bf16.msra.mxu0 0
  %835 = vmatpush.bf16.msra.mxu0 0
  %836 = vmatpush.bf16.msra.mxu0 0
  %837 = vmatpush.bf16.msra.mxu0 0
  %838 = vmatpush.bf16.msra.mxu0 0
  %839 = vmatpush.bf16.msra.mxu0 0
  %840 = vmatpush.bf16.msra.mxu0 0
  %841 = vmatpush.bf16.msra.mxu0 %v822
  %842 = vmatmul.bf16.gmra.mxu0 %v832
  %v843 = vpop.f32.mrf.mxu0
  %v844 = vadd.f32 %v828, %v843
  %v845 = vpop.f32.mrf.mxu0
  %846 = vdwg.mxu0
  %v847 = vpack.c.bf16 %v844, %v844
  %v848 = vld [vmem:[%s29] sm:$0xf]
  %v849 = vld [vmem:[%s29 + $0x4] sm:$0xf]
  %v850 = vld [vmem:[%s29 + $0x8] sm:$0xf]
  %v851 = vld [vmem:[%s29 + $0xc] sm:$0xf]
  %v856 = vunpack.c.l.b16 %v848
  %v857 = vunpack.c.l.b16 %v849
  %v858 = vunpack.c.l.b16 %v850
  %v859 = vunpack.c.l.b16 %v851
  %v860 = vpack.c.b16 %v857, %v856
  %v861 = vpack.c.b16 %v859, %v858
  %vm864 = vcmask 261120
  %v866 = vsel %vm864, %v847, 0
  %868 = vmatpush.bf16.msra.mxu0 0
  %869 = vmatpush.bf16.msra.mxu0 0
  %870 = vmatpush.bf16.msra.mxu0 0
  %871 = vmatpush.bf16.msra.mxu0 0
  %872 = vmatpush.bf16.msra.mxu0 0
  %873 = vmatpush.bf16.msra.mxu0 0
  %874 = vmatpush.bf16.msra.mxu0 %v861
  %875 = vmatpush.bf16.msra.mxu0 %v860
  %876 = vmatmul.bf16.gmra.mxu0 %v866
  %v877 = vpop.f32.mrf.mxu0
  %v878 = vadd.f32 0.0, %v877
  %v879 = vpop.f32.mrf.mxu0
  %880 = vdwg.mxu0
  %v881 = vxor.u32 %v878, 2147483648
  %v882 = vmul.f32 %v881, 1.442695
  %v883 = vpow.pop %v882
  %v884 = vadd.f32 %v883, 1.0
  %v885 = vrcp.pop %v884
  %v886 = vmul.f32 %v884, %v885
  %v887 = vsub.f32 1.0, %v886
  %v888 = vmul.f32 %v885, %v887
  %v889 = vadd.f32 %v885, %v888
  %vm890 = vweird.f32 %v884
  %vm891 = vweird.f32 %v885
  %vm892 = vmor %vm890, %vm891
  %v893 = vsel %vm892, %v885, %v889
  %v894 = vand.u32 2147483647, %v884
  %vm895 = vcmp.eq.f32.partialorder %v894, 8.507059e+37
  %v896 = vand.u32 %v884, 2147483648
  %v897 = vor.u32 1.1754944e-38, %v896
  %v898 = vsel %vm895, %v897, %v893
  %v899 = vmul.f32 1.0, %v898
  %900 = vst.msk [vmem:[%s57] sm:$0x1f] %vm675, %v899
  %v901 = vxor.u32 %v844, 2147483648
  %v902 = vmul.f32 %v901, 1.442695
  %v903 = vpow.pop %v902
  %v904 = vadd.f32 %v903, 1.0
  %v905 = vrcp.pop %v904
  %v906 = vmul.f32 %v904, %v905
  %v907 = vsub.f32 1.0, %v906
  %v908 = vmul.f32 %v905, %v907
  %v909 = vadd.f32 %v905, %v908
  %vm910 = vweird.f32 %v904
  %vm911 = vweird.f32 %v905
  %vm912 = vmor %vm910, %vm911
  %v913 = vsel %vm912, %v905, %v909
  %v914 = vand.u32 2147483647, %v904
  %vm915 = vcmp.eq.f32.partialorder %v914, 8.507059e+37
  %v916 = vand.u32 %v904, 2147483648
  %v917 = vor.u32 1.1754944e-38, %v916
  %v918 = vsel %vm915, %v917, %v913
  %v919 = vmul.f32 1.0, %v918
  %v920 = vpack.c.bf16 %v919, %v919
  %vm921 = vcmask 256000
  %vm922 = vmand %vm921, %vm698
  %v923 = vld [vmem:[%s59] sm:$0x7]
  %v924 = vsel %vm922, %v920, %v923
  %925 = vst [vmem:[%s59] sm:$0x7] %v924
  %v926 = vld [vmem:[%s31] sm:$0xf]
  %v927 = vld [vmem:[%s31 + $0x4] sm:$0xf]
  %v928 = vld [vmem:[%s31 + $0x8] sm:$0xf]
  %v929 = vld [vmem:[%s31 + $0xc] sm:$0xf]
  %v934 = vunpack.c.l.b16 %v926
  %v935 = vunpack.c.l.b16 %v927
  %v936 = vunpack.c.l.b16 %v928
  %v937 = vunpack.c.l.b16 %v929
  %v938 = vpack.c.b16 %v935, %v934
  %v939 = vpack.c.b16 %v937, %v936
  %v943 = vsel %vm864, %v822, 0
  %945 = vmatpush.bf16.msra.mxu0 0
  %946 = vmatpush.bf16.msra.mxu0 0
  %947 = vmatpush.bf16.msra.mxu0 0
  %948 = vmatpush.bf16.msra.mxu0 0
  %949 = vmatpush.bf16.msra.mxu0 0
  %950 = vmatpush.bf16.msra.mxu0 0
  %951 = vmatpush.bf16.msra.mxu0 %v939
  %952 = vmatpush.bf16.msra.mxu0 %v938
  %953 = vmatmul.bf16.gmra.mxu0 %v943
  %v954 = vpop.f32.mrf.mxu0
  %v955 = vadd.f32 0.0, %v954
  %v956 = vpop.f32.mrf.mxu0
  %v957 = vadd.f32 0.0, %v956
  %958 = vdwg.mxu0
  %v959 = vpack.c.bf16 %v957, %v955
  %v960 = vld [vmem:[%s33] sm:$0xf]
  %v961 = vld [vmem:[%s33 + $0x4] sm:$0xf]
  %v962 = vld [vmem:[%s33 + $0x8] sm:$0xf]
  %v963 = vld [vmem:[%s35] sm:$0xff]
  %v964 = vld [vmem:[%s35 + $0x8] sm:$0xff]
  %v965 = vld [vmem:[%s35 + $0x10] sm:$0xff]
  %967 = vset.pattern.permute.xlu0 0
  %968 = vperm.xlu0 %967, %v963
  %v969 = vpop.permute.xlu0 %968
  %972 = vset.pattern.permute.xlu0 0
  %973 = vperm.xlu0 %972, %v964
  %v974 = vpop.permute.xlu0 %973
  %977 = vset.pattern.permute.xlu0 0
  %978 = vperm.xlu0 %977, %v965
  %v979 = vpop.permute.xlu0 %978
  %v984 = vunpack.c.l.b16 %v960
  %v985 = vunpack.c.l.b16 %v961
  %v986 = vunpack.c.l.b16 %v962
  %v987 = vpack.c.b16 %v985, %v984
  %v988 = vpack.c.b16 %v986, %v986
  %v990 = vsel %vm830, %v987, 0
  %v993 = vsel %vm830, %v988, 0
  %995 = vmatpush.bf16.msra.mxu0 0
  %996 = vmatpush.bf16.msra.mxu0 0
  %997 = vmatpush.bf16.msra.mxu0 0
  %998 = vmatpush.bf16.msra.mxu0 0
  %999 = vmatpush.bf16.msra.mxu0 0
  %1000 = vmatpush.bf16.msra.mxu0 0
  %1001 = vmatpush.bf16.msra.mxu0 0
  %1002 = vmatpush.bf16.msra.mxu0 %v959
  %1003 = vmatmul.bf16.gmra.mxu0 %v990
  %v1004 = vpop.f32.mrf.mxu0
  %v1005 = vadd.f32 %v969, %v1004
  %v1006 = vpop.f32.mrf.mxu0
  %v1007 = vadd.f32 %v974, %v1006
  %1008 = vmatmul.bf16.gmra.mxu0 %v993
  %v1009 = vpop.f32.mrf.mxu0
  %v1010 = vadd.f32 %v979, %v1009
  %v1011 = vpop.f32.mrf.mxu0
  %1012 = vdwg.mxu0
  %v1013 = vmax.f32 %v1005, 0.0
  %v1014 = vmax.f32 %v1007, 0.0
  %v1015 = vmax.f32 %v1010, 0.0
  %v1016 = vpack.c.bf16 %v1014, %v1013
  %v1017 = vpack.c.bf16 %v1015, %v1015
  %v1018 = vld [vmem:[%s37] sm:$0x7]
  %v1019 = vld [vmem:[%s39] sm:$0x1f]
  %1021 = vset.pattern.permute.xlu0 0
  %1022 = vperm.xlu0 %1021, %v1019
  %v1023 = vpop.permute.xlu0 %1022
  %vm1025 = vcmask 195584
  %v1027 = vsel %vm1025, %v1018, 0
  %v1030 = vsel %vm561, %v1017, 0
  %1032 = vmatpush.bf16.msra.mxu0 0
  %1033 = vmatpush.bf16.msra.mxu0 0
  %1034 = vmatpush.bf16.msra.mxu0 0
  %1035 = vmatpush.bf16.msra.mxu0 0
  %1036 = vmatpush.bf16.msra.mxu0 0
  %1037 = vmatpush.bf16.msra.mxu0 0
  %1038 = vmatpush.bf16.msra.mxu0 %v1030
  %1039 = vmatpush.bf16.msra.mxu0 %v1016
  %1040 = vmatmul.bf16.gmra.mxu0 %v1027
  %v1041 = vpop.f32.mrf.mxu0
  %v1042 = vadd.f32 %v1023, %v1041
  %v1043 = vpop.f32.mrf.mxu0
  %1044 = vdwg.mxu0
  %v1045 = vpack.c.bf16 %v1042, %v1042
  %v1046 = vld [vmem:[%s41] sm:$0xf]
  %v1048 = vsel %vm557, %v1045, 0
  %v1051 = vsel %vm561, %v1046, 0
  %1053 = vmatpush.bf16.msra.mxu0 0
  %1054 = vmatpush.bf16.msra.mxu0 0
  %1055 = vmatpush.bf16.msra.mxu0 0
  %1056 = vmatpush.bf16.msra.mxu0 0
  %1057 = vmatpush.bf16.msra.mxu0 0
  %1058 = vmatpush.bf16.msra.mxu0 0
  %1059 = vmatpush.bf16.msra.mxu0 0
  %1060 = vmatpush.bf16.msra.mxu0 %v1051
  %1061 = vmatmul.bf16.gmra.mxu0 %v1048
  %v1062 = vpop.f32.mrf.mxu0
  %v1063 = vadd.f32 0.0, %v1062
  %v1064 = vpop.f32.mrf.mxu0
  %1065 = vdwg.mxu0
  %v1066 = vxor.u32 %v1063, 2147483648
  %v1067 = vmul.f32 %v1066, 1.442695
  %v1068 = vpow.pop %v1067
  %v1069 = vadd.f32 %v1068, 1.0
  %v1070 = vrcp.pop %v1069
  %v1071 = vmul.f32 %v1069, %v1070
  %v1072 = vsub.f32 1.0, %v1071
  %v1073 = vmul.f32 %v1070, %v1072
  %v1074 = vadd.f32 %v1070, %v1073
  %vm1075 = vweird.f32 %v1069
  %vm1076 = vweird.f32 %v1070
  %vm1077 = vmor %vm1075, %vm1076
  %v1078 = vsel %vm1077, %v1070, %v1074
  %v1079 = vand.u32 2147483647, %v1069
  %vm1080 = vcmp.eq.f32.partialorder %v1079, 8.507059e+37
  %v1081 = vand.u32 %v1069, 2147483648
  %v1082 = vor.u32 1.1754944e-38, %v1081
  %v1083 = vsel %vm1080, %v1082, %v1078
  %v1084 = vmul.f32 1.0, %v1083
  %1085 = vst.msk [vmem:[%s61] sm:$0x1f] %vm675, %v1084
  %v1086 = vxor.u32 %v1042, 2147483648
  %v1087 = vmul.f32 %v1086, 1.442695
  %v1088 = vpow.pop %v1087
  %v1089 = vadd.f32 %v1088, 1.0
  %v1090 = vrcp.pop %v1089
  %v1091 = vmul.f32 %v1089, %v1090
  %v1092 = vsub.f32 1.0, %v1091
  %v1093 = vmul.f32 %v1090, %v1092
  %v1094 = vadd.f32 %v1090, %v1093
  %vm1095 = vweird.f32 %v1089
  %vm1096 = vweird.f32 %v1090
  %vm1097 = vmor %vm1095, %vm1096
  %v1098 = vsel %vm1097, %v1090, %v1094
  %v1099 = vand.u32 2147483647, %v1089
  %vm1100 = vcmp.eq.f32.partialorder %v1099, 8.507059e+37
  %v1101 = vand.u32 %v1089, 2147483648
  %v1102 = vor.u32 1.1754944e-38, %v1101
  %v1103 = vsel %vm1100, %v1102, %v1098
  %v1104 = vmul.f32 1.0, %v1103
  %v1105 = vpack.c.bf16 %v1104, %v1104
  %vm1106 = vcmask 59392
  %vm1107 = vmand %vm1106, %vm698
  %v1108 = vld [vmem:[%s63] sm:$0x7]
  %v1109 = vsel %vm1107, %v1105, %v1108
  %1110 = vst [vmem:[%s63] sm:$0x7] %v1109
  %v1111 = vld [vmem:[%s43] sm:$0xf]
  %v1112 = vld [vmem:[%s43 + $0x4] sm:$0xf]
  %v1113 = vld [vmem:[%s43 + $0x8] sm:$0xf]
  %v1114 = vld [vmem:[%s43 + $0xc] sm:$0xf]
  %v1115 = vld [vmem:[%s45] sm:$0xff]
  %v1116 = vld [vmem:[%s45 + $0x8] sm:$0xff]
  %v1117 = vld [vmem:[%s45 + $0x10] sm:$0xff]
  %v1118 = vld [vmem:[%s45 + $0x18] sm:$0xff]
  %1120 = vset.pattern.permute.xlu0 0
  %1121 = vperm.xlu0 %1120, %v1115
  %v1122 = vpop.permute.xlu0 %1121
  %1125 = vset.pattern.permute.xlu0 0
  %1126 = vperm.xlu0 %1125, %v1116
  %v1127 = vpop.permute.xlu0 %1126
  %1130 = vset.pattern.permute.xlu0 0
  %1131 = vperm.xlu0 %1130, %v1117
  %v1132 = vpop.permute.xlu0 %1131
  %1135 = vset.pattern.permute.xlu0 0
  %1136 = vperm.xlu0 %1135, %v1118
  %v1137 = vpop.permute.xlu0 %1136
  %v1143 = vunpack.c.l.b16 %v1111
  %v1144 = vunpack.c.l.b16 %v1112
  %v1145 = vunpack.c.l.b16 %v1113
  %v1146 = vunpack.c.l.b16 %v1114
  %v1147 = vpack.c.b16 %v1144, %v1143
  %v1148 = vpack.c.b16 %v1146, %v1145
  %v1150 = vsel %vm1025, %v1147, 0
  %v1153 = vsel %vm1025, %v1148, 0
  %1155 = vmatpush.bf16.msra.mxu0 0
  %1156 = vmatpush.bf16.msra.mxu0 0
  %1157 = vmatpush.bf16.msra.mxu0 0
  %1158 = vmatpush.bf16.msra.mxu0 0
  %1159 = vmatpush.bf16.msra.mxu0 0
  %1160 = vmatpush.bf16.msra.mxu0 0
  %1161 = vmatpush.bf16.msra.mxu0 %v1030
  %1162 = vmatpush.bf16.msra.mxu0 %v1016
  %1163 = vmatmul.bf16.gmra.mxu0 %v1150
  %v1164 = vpop.f32.mrf.mxu0
  %v1165 = vadd.f32 %v1122, %v1164
  %v1166 = vpop.f32.mrf.mxu0
  %v1167 = vadd.f32 %v1127, %v1166
  %1168 = vmatmul.bf16.gmra.mxu0 %v1153
  %v1169 = vpop.f32.mrf.mxu0
  %v1170 = vadd.f32 %v1132, %v1169
  %v1171 = vpop.f32.mrf.mxu0
  %v1172 = vadd.f32 %v1137, %v1171
  %1173 = vdwg.mxu0
  %v1174 = vmax.f32 %v1165, 0.0
  %v1175 = vmax.f32 %v1167, 0.0
  %v1176 = vmax.f32 %v1170, 0.0
  %v1177 = vmax.f32 %v1172, 0.0
  %v1178 = vpack.c.bf16 %v1175, %v1174
  %v1179 = vpack.c.bf16 %v1177, %v1176
  %v1180 = vld [vmem:[%s47] sm:$0x7]
  %v1181 = vld [vmem:[%s49] sm:$0x1f]
  %1183 = vset.pattern.permute.xlu0 0
  %1184 = vperm.xlu0 %1183, %v1181
  %v1185 = vpop.permute.xlu0 %1184
  %v1188 = vsel %vm864, %v1180, 0
  %1190 = vmatpush.bf16.msra.mxu0 0
  %1191 = vmatpush.bf16.msra.mxu0 0
  %1192 = vmatpush.bf16.msra.mxu0 0
  %1193 = vmatpush.bf16.msra.mxu0 0
  %1194 = vmatpush.bf16.msra.mxu0 0
  %1195 = vmatpush.bf16.msra.mxu0 0
  %1196 = vmatpush.bf16.msra.mxu0 %v1179
  %1197 = vmatpush.bf16.msra.mxu0 %v1178
  %1198 = vmatmul.bf16.gmra.mxu0 %v1188
  %v1199 = vpop.f32.mrf.mxu0
  %v1200 = vadd.f32 %v1185, %v1199
  %v1201 = vpop.f32.mrf.mxu0
  %1202 = vdwg.mxu0
  %v1203 = vpack.c.bf16 %v1200, %v1200
  %v1204 = vld [vmem:[%s51] sm:$0xf]
  %v1206 = vsel %vm557, %v1203, 0
  %v1209 = vsel %vm561, %v1204, 0
  %1211 = vmatpush.bf16.msra.mxu0 0
  %1212 = vmatpush.bf16.msra.mxu0 0
  %1213 = vmatpush.bf16.msra.mxu0 0
  %1214 = vmatpush.bf16.msra.mxu0 0
  %1215 = vmatpush.bf16.msra.mxu0 0
  %1216 = vmatpush.bf16.msra.mxu0 0
  %1217 = vmatpush.bf16.msra.mxu0 0
  %1218 = vmatpush.bf16.msra.mxu0 %v1209
  %1219 = vmatmul.bf16.gmra.mxu0 %v1206
  %v1220 = vpop.f32.mrf.mxu0
  %v1221 = vadd.f32 0.0, %v1220
  %v1222 = vpop.f32.mrf.mxu0
  %1223 = vdwg.mxu0
  %v1224 = vxor.u32 %v1221, 2147483648
  %v1225 = vmul.f32 %v1224, 1.442695
  %v1226 = vpow.pop %v1225
  %v1227 = vadd.f32 %v1226, 1.0
  %v1228 = vrcp.pop %v1227
  %v1229 = vmul.f32 %v1227, %v1228
  %v1230 = vsub.f32 1.0, %v1229
  %v1231 = vmul.f32 %v1228, %v1230
  %v1232 = vadd.f32 %v1228, %v1231
  %vm1233 = vweird.f32 %v1227
  %vm1234 = vweird.f32 %v1228
  %vm1235 = vmor %vm1233, %vm1234
  %v1236 = vsel %vm1235, %v1228, %v1232
  %v1237 = vand.u32 2147483647, %v1227
  %vm1238 = vcmp.eq.f32.partialorder %v1237, 8.507059e+37
  %v1239 = vand.u32 %v1227, 2147483648
  %v1240 = vor.u32 1.1754944e-38, %v1239
  %v1241 = vsel %vm1238, %v1240, %v1236
  %v1242 = vmul.f32 1.0, %v1241
  %1243 = vst.msk [vmem:[%s65] sm:$0x1f] %vm675, %v1242
  %v1244 = vxor.u32 %v1200, 2147483648
  %v1245 = vmul.f32 %v1244, 1.442695
  %v1246 = vpow.pop %v1245
  %v1247 = vadd.f32 %v1246, 1.0
  %v1248 = vrcp.pop %v1247
  %v1249 = vmul.f32 %v1247, %v1248
  %v1250 = vsub.f32 1.0, %v1249
  %v1251 = vmul.f32 %v1248, %v1250
  %v1252 = vadd.f32 %v1248, %v1251
  %vm1253 = vweird.f32 %v1247
  %vm1254 = vweird.f32 %v1248
  %vm1255 = vmor %vm1253, %vm1254
  %v1256 = vsel %vm1255, %v1248, %v1252
  %v1257 = vand.u32 2147483647, %v1247
  %vm1258 = vcmp.eq.f32.partialorder %v1257, 8.507059e+37
  %v1259 = vand.u32 %v1247, 2147483648
  %v1260 = vor.u32 1.1754944e-38, %v1259
  %v1261 = vsel %vm1258, %v1260, %v1256
  %v1262 = vmul.f32 1.0, %v1261
  %v1263 = vpack.c.bf16 %v1262, %v1262
  %v1264 = vld [vmem:[%s67] sm:$0x7]
  %v1265 = vsel %vm1107, %v1263, %v1264
  %1266 = vst [vmem:[%s67] sm:$0x7] %v1265
  // Predicated region
  $region106: #{forward.1} parent=0 // pred_check
    _
  $region107: #{forward.1} parent=0 // pred_check_branch
    %1268 = sbr.rel (0) target = $region109
  $region108: #{forward.1} parent=0 // pred_region
    _
  $region109: #{forward.1} parent=0 // pred_fallthru
    _
  // Predicated region
  $region110: #{forward.1} parent=0 // pred_check
    _
  $region111: #{forward.1} parent=0 // pred_check_branch
    %1270 = sbr.rel (0) target = $region113
  $region112: #{forward.1} parent=0 // pred_region
    _
  $region113: #{forward.1} parent=0 // pred_fallthru
    _
  // Predicated region
  $region114: #{forward.1} parent=0 // pred_check
    _
  $region115: #{forward.1} parent=0 // pred_check_branch
    %1272 = sbr.rel (0) target = $region117
  $region116: #{forward.1} parent=0 // pred_region
    _
  $region117: #{forward.1} parent=0 // pred_fallthru
    _
  // Predicated region
  $region118: #{forward.1} parent=0 // pred_check
    _
  $region119: #{forward.1} parent=0 // pred_check_branch
    %1274 = sbr.rel (0) target = $region121
  $region120: #{forward.1} parent=0 // pred_region
    _
  $region121: #{forward.1} parent=0 // pred_fallthru
    _
  // Predicated region
  $region122: #{forward.1} parent=0 // pred_check
    _
  $region123: #{forward.1} parent=0 // pred_check_branch
    %1276 = sbr.rel (0) target = $region125
  $region124: #{forward.1} parent=0 // pred_region
    _
  $region125: #{forward.1} parent=0 // pred_fallthru
    _
  // Predicated region
  $region126: #{forward.1} parent=0 // pred_check
    _
  $region127: #{forward.1} parent=0 // pred_check_branch
    %1278 = sbr.rel (0) target = $region129
  $region128: #{forward.1} parent=0 // pred_region
    _
  $region129: #{forward.1} parent=0 // pred_fallthru
    _
  // Predicated region
  $region130: #{forward.1} parent=0 // pred_check
    _
  $region131: #{forward.1} parent=0 // pred_check_branch
    %1280 = sbr.rel (0) target = $region133
  $region132: #{forward.1} parent=0 // pred_region
    _
  $region133: #{forward.1} parent=0 // pred_fallthru
    _
  // Predicated region
  $region134: #{forward.1} parent=0 // pred_check
    _
  $region135: #{forward.1} parent=0 // pred_check_branch
    %1282 = sbr.rel (0) target = $region137
  $region136: #{forward.1} parent=0 // pred_region
    _
  $region137: #{forward.1} parent=0 // pred_fallthru
    _
  // Predicated region
  $region138: #{forward.1} parent=0 // pred_check
    _
  $region139: #{forward.1} parent=0 // pred_check_branch
    %1284 = sbr.rel (0) target = $region141
  $region140: #{forward.1} parent=0 // pred_region
    _
  $region141: #{forward.1} parent=0 // pred_fallthru
    _
  // Predicated region
  $region142: #{forward.1} parent=0 // pred_check
    _
  $region143: #{forward.1} parent=0 // pred_check_branch
    %1286 = sbr.rel (0) target = $region145
  $region144: #{forward.1} parent=0 // pred_region
    _
  $region145: #{forward.1} parent=0 // pred_fallthru
    _
  // Predicated region
  $region146: #{forward.1} parent=0 // pred_check
    _
  $region147: #{forward.1} parent=0 // pred_check_branch
    %1288 = sbr.rel (0) target = $region149
  $region148: #{forward.1} parent=0 // pred_region
    _
  $region149: #{forward.1} parent=0 // pred_fallthru
    _
  // Predicated region
  $region150: #{forward.1} parent=0 // pred_check
    _
  $region151: #{forward.1} parent=0 // pred_check_branch
    %1290 = sbr.rel (0) target = $region153
  $region152: #{forward.1} parent=0 // pred_region
    _
  $region153: #{forward.1} parent=0 // pred_fallthru
    _
  // Predicated region
  $region154: #{forward.1} parent=0 // pred_check
    _
  $region155: #{forward.1} parent=0 // pred_check_branch
    %1292 = sbr.rel (0) target = $region157
  $region156: #{forward.1} parent=0 // pred_region
    _
  $region157: #{forward.1} parent=0 // pred_fallthru
    _
  // Predicated region
  $region158: #{forward.1} parent=0 // pred_check
    _
  $region159: #{forward.1} parent=0 // pred_check_branch
    %1294 = sbr.rel (0) target = $region161
  $region160: #{forward.1} parent=0 // pred_region
    _
  $region161: #{forward.1} parent=0 // pred_fallthru
    _
  // Predicated region
  $region162: #{forward.1} parent=0 // pred_check
    _
  $region163: #{forward.1} parent=0 // pred_check_branch
    %1296 = sbr.rel (0) target = $region165
  $region164: #{forward.1} parent=0 // pred_region
    _
  $region165: #{forward.1} parent=0 // pred_fallthru
    _
  // Predicated region
  $region166: #{forward.1} parent=0 // pred_check
    _
  $region167: #{forward.1} parent=0 // pred_check_branch
    %1298 = sbr.rel (0) target = $region169
  $region168: #{forward.1} parent=0 // pred_region
    _
  $region169: #{forward.1} parent=0 // pred_fallthru
    _

</llo_original>
